<compile_context>
chip_gen: v7x
topology: tpu7x:2x2x1
jax: 0.10.0
libtpu: 0.0.40
codegen_flags: <defaults>
</compile_context>

<pallas_src>
import math
from functools import partial

import numpy as np
import jax
import jax.numpy as jnp
from jax.experimental import pallas as pl
from jax.experimental.pallas import tpu as pltpu


def _erf(x):
    # Abramowitz & Stegun 7.1.26 rational approximation, |abs err| <= 1.5e-7.
    # Reproduces the exact (erf-based) nn.GELU() with ops guaranteed to lower
    # in Mosaic (mul/add/exp/div/select).  The divide is kept exact: the EUP
    # approx-reciprocal win is irrelevant at this (overhead-bound) size and
    # would eat into the 1e-3 f32 tolerance.
    a1, a2, a3, a4, a5 = (0.254829592, -0.284496736, 1.421413741,
                          -1.453152027, 1.061405429)
    p = 0.3275911
    ax = jnp.abs(x)
    t = 1.0 / (1.0 + p * ax)
    poly = ((((a5 * t + a4) * t + a3) * t + a2) * t + a1) * t
    y = 1.0 - poly * jnp.exp(-ax * ax)
    return jnp.where(x < 0, -y, y)


def _gelu_exact(x):
    # matches torch nn.GELU() default (erf-based, not tanh approximation)
    return 0.5 * x * (1.0 + _erf(x * (1.0 / math.sqrt(2.0))))


def hit_kernel(x_ref, w_in_t_ref, b_in_ref, mu_t_ref, bu_ref, mv_t_ref,
               bv_ref, w_o_t_ref, b_o_ref, o_ref, *, channels, images):
    C, B = channels, images
    x = x_ref[...]                                       # (B, C, HW) f32

    # LayerNorm over channels == sublane-axis reduce (torch eps=1e-5, biased).
    mean = jnp.mean(x, axis=1, keepdims=True)            # (B, 1, HW)
    xc = x - mean
    var = jnp.mean(xc * xc, axis=1, keepdims=True)
    xn = xc * jax.lax.rsqrt(var + 1e-5)                  # LN affine folded in W_in

    # Linear_in (LN affine pre-folded) + exact GELU, per image.  K = C is tiny
    # so these stay per-image; the MXU-filling work is the stacked mixer
    # matmuls below.  B is a small compile-time constant -> static unroll.
    w_in_t = w_in_t_ref[...]                             # (2C, C)
    b_in = b_in_ref[...]                                 # (2C, 1)
    ts = []
    for b in range(B):
        t = jnp.dot(w_in_t, xn[b], preferred_element_type=jnp.float32)
        ts.append(_gelu_exact(t + b_in))                 # (2C, HW)

    # Stack every image's u rows (and v rows) on the sublane axis so the
    # FLOP-dominant (., HW) @ (HW, HW) mixers see a (B*C)-row LHS.
    u = jnp.concatenate([t[:C] for t in ts], axis=0)     # (B*C, HW)
    v = jnp.concatenate([t[C:] for t in ts], axis=0)     # (B*C, HW)

    # Spatial mixing (grid mix for u, intra-block mix for v) as right-matmuls
    # against the transposed mixers: MXU shapes M=B*C, K=HW, N=HW (lane-dense
    # output).  Operands in the mixers' dtype (bf16 shipped), f32 accumulation.
    mu = mu_t_ref[...]
    mv = mv_t_ref[...]
    u = jnp.dot(u.astype(mu.dtype), mu,
                preferred_element_type=jnp.float32) + bu_ref[...]
    v = jnp.dot(v.astype(mv.dtype), mv,
                preferred_element_type=jnp.float32) + bv_ref[...]

    # linear_out fused with the 1x1 conv, u/v halves fused into a single
    # (Cout, 2C) @ (2C, HW) matmul per image.  Dense full-lane stores.
    w_o_t = w_o_t_ref[...]                               # (Cout, 2C)
    b_o = b_o_ref[...]                                   # (Cout, 1)
    for b in range(B):
        uv = jnp.concatenate(
            [u[b * C:(b + 1) * C], v[b * C:(b + 1) * C]], axis=0)  # (2C, HW)
        out = jnp.dot(w_o_t, uv, preferred_element_type=jnp.float32) + b_o
        o_ref[b] = out.astype(o_ref.dtype)


def _choose_image_block(n, c, target_rows):
    # Fill the MXU sublane dim on the mixer matmuls (B*C rows; 128 suits the
    # v5e 4x128x128 MXU, 256 would suit v6e/v7x) while keeping >= 2 grid steps
    # so both v7x TensorCores get work (v5e/v6e have a single TC: no cost).
    b = max(1, min(n, max(1, target_rows // max(c, 1))))
    while b > 1 and (n % b != 0 or (n // b) < 2):
        b -= 1
    return b


def hit_forward(x_nchw, params, grid_size, *, mixer_dtype=jnp.bfloat16,
                target_rows=128):
    N, C, H, W = x_nchw.shape
    GH, GW = grid_size
    assert H % GH == 0 and W % GW == 0
    assert GH == GW, "linear_transpose requires a square grid (GH == GW)"
    HW = H * W
    assert C % 8 == 0 and HW % 128 == 0, "sublane/lane alignment"
    Cout = params["w_conv"].shape[1]

    # NCHW is already (channels, spatial) per image -> just flatten H, W.
    x = x_nchw.reshape(N, C, HW)

    # ---------- host-side (numpy) parameter fusion & mixer expansion ----------
    f32 = np.float32
    ln_g = np.asarray(params["ln_g"], f32)
    ln_b = np.asarray(params["ln_b"], f32)
    w_in = np.asarray(params["w_in"], f32)        # (C, 2C)
    b_in = np.asarray(params["b_in"], f32)        # (2C,)
    w_t = np.asarray(params["w_t"], f32)          # (S, S), torch [out, in]
    b_t = np.asarray(params["b_t"], f32)          # (S,)
    w_out = np.asarray(params["w_out"], f32)      # (2C, C)
    b_out = np.asarray(params["b_out"], f32)      # (C,)
    w_conv = np.asarray(params["w_conv"], f32)    # (C, Cout)
    b_conv = np.asarray(params["b_conv"], f32)    # (Cout,)

    # Fold LayerNorm affine into Linear_in; kernel consumes the transpose.
    w_in_t = np.ascontiguousarray((ln_g[:, None] * w_in).T)     # (2C, C)
    b_in_f = (ln_b @ w_in + b_in)[:, None].astype(f32)          # (2C, 1)

    # Fuse linear_out with the 1x1 conv (both per-pixel linear maps) and fuse
    # the u/v halves into a single (Cout, 2C) output matrix.
    w_uo_t = (w_out[:C] @ w_conv).T                              # (Cout, C)
    w_vo_t = (w_out[C:] @ w_conv).T                              # (Cout, C)
    w_o_t = np.ascontiguousarray(
        np.concatenate([w_uo_t, w_vo_t], axis=1)).astype(f32)   # (Cout, 2C)
    b_o = (b_out @ w_conv + b_conv)[:, None].astype(f32)        # (Cout, 1)

    # Dense spatial mixers, transposed for right-multiplication on (B*C, HW).
    fh, fw = H // GH, W // GW
    hh = np.arange(H)[:, None]
    ww = np.arange(W)[None, :]
    # u path: mix across grid cells g, identity over intra-patch position p.
    g = ((hh // fh) * GW + (ww // fw)).reshape(-1)
    p = ((hh % fh) * fw + (ww % fw)).reshape(-1)
    mu_t = (w_t[g[None, :], g[:, None]] * (p[:, None] == p[None, :])).astype(f32)
    bias_u = b_t[g][None, :].astype(f32)                        # (1, HW)
    # v path: mix across intra-block positions r, identity over block index q.
    q = ((hh // GH) * (W // GW) + (ww // GW)).reshape(-1)
    r = ((hh % GH) * GW + (ww % GW)).reshape(-1)
    mv_t = (w_t[r[None, :], r[:, None]] * (q[:, None] == q[None, :])).astype(f32)
    bias_v = b_t[r][None, :].astype(f32)                        # (1, HW)

    # Mixer operands shipped in bf16 (MXU-native, half VMEM/DMA) by default.
    mu_t_q = jnp.asarray(mu_t, dtype=mixer_dtype)
    mv_t_q = jnp.asarray(mv_t, dtype=mixer_dtype)

    # Batch B images per grid step (stacked on the sublane axis in-kernel).
    B = _choose_image_block(N, C, target_rows)
    grid = (N // B,)

    def const_spec(shape):
        nd = len(shape)
        # Constant index_map + single buffering: DMA'd once, half the VMEM.
        return pl.BlockSpec(shape, lambda n, _nd=nd: (0,) * _nd,
                            pipeline_mode=pl.Buffered(1))

    consts = (w_in_t, b_in_f, mu_t_q, bias_u, mv_t_q, bias_v, w_o_t, b_o)
    const_bytes = sum(int(a.size) * a.dtype.itemsize for a in consts)
    block_io_bytes = 2 * (B * C * HW * 4 + B * Cout * HW * 4)   # double-buffered
    tmp_bytes = 8 * B * C * HW * 4                              # in-kernel temps
    vmem_limit = int(min(max(2 * (const_bytes + block_io_bytes + tmp_bytes),
                             16 * 2 ** 20), 64 * 2 ** 20))

    kernel = partial(hit_kernel, channels=C, images=B)
    out = pl.pallas_call(
        kernel,
        out_shape=jax.ShapeDtypeStruct((N, Cout, HW), jnp.float32),
        grid=grid,
        in_specs=[
            pl.BlockSpec((B, C, HW), lambda n: (n, 0, 0)),       # x (streamed)
            const_spec((2 * C, C)), const_spec((2 * C, 1)),      # fused Linear_in
            const_spec((HW, HW)), const_spec((1, HW)),           # u mixer + bias
            const_spec((HW, HW)), const_spec((1, HW)),           # v mixer + bias
            const_spec((Cout, 2 * C)), const_spec((Cout, 1)),    # fused out+conv
        ],
        out_specs=pl.BlockSpec((B, Cout, HW), lambda n: (n, 0, 0)),
        compiler_params=pltpu.CompilerParams(
            dimension_semantics=("parallel",),
            vmem_limit_bytes=vmem_limit),
    )(
        x,
        w_in_t, b_in_f, mu_t_q, bias_u, mv_t_q, bias_v, w_o_t, b_o,
    )
    return out.reshape(N, Cout, H, W)                            # already NCHW


def hit_reference(x_nchw, params, grid_size):
    """Pure-JAX mirror of the PyTorch forward (for a correctness check)."""
    hp = jax.lax.Precision.HIGHEST
    N, C, H, W = x_nchw.shape
    GH, GW = grid_size
    x = jnp.transpose(x_nchw, (0, 2, 3, 1))
    mean = x.mean(-1, keepdims=True)
    var = ((x - mean) ** 2).mean(-1, keepdims=True)
    y = (x - mean) / jnp.sqrt(var + 1e-5) * params["ln_g"] + params["ln_b"]
    t = jnp.einsum("nhwc,cd->nhwd", y, params["w_in"], precision=hp) + params["b_in"]
    t = jax.nn.gelu(t, approximate=False)
    u, v = t[..., :C], t[..., C:]
    FH, FW = H // GH, W // GW
    ub = u.reshape(N, GH, FH, GW, FW, C).transpose(0, 1, 3, 2, 4, 5).reshape(
        N, GH * GW, FH * FW, C)
    ub = jnp.einsum("og,ngpc->nopc", params["w_t"], ub,
                    precision=hp) + params["b_t"][None, :, None, None]
    u2 = ub.reshape(N, GH, GW, FH, FW, C).transpose(0, 1, 3, 2, 4, 5).reshape(N, H, W, C)
    G2H, G2W = H // GH, W // GW
    vb = v.reshape(N, G2H, GH, G2W, GW, C).transpose(0, 1, 3, 2, 4, 5).reshape(
        N, G2H * G2W, GH * GW, C)
    vb = jnp.einsum("or,nqrc->nqoc", params["w_t"], vb,
                    precision=hp) + params["b_t"][None, None, :, None]
    v2 = vb.reshape(N, G2H, G2W, GH, GW, C).transpose(0, 1, 3, 2, 4, 5).reshape(N, H, W, C)
    z = jnp.concatenate([u2, v2], axis=-1)
    z = jnp.einsum("nhwd,dc->nhwc", z, params["w_out"], precision=hp) + params["b_out"]
    out = jnp.einsum("nhwc,co->nhwo", z, params["w_conv"], precision=hp) + params["b_conv"]
    return jnp.transpose(out, (0, 3, 1, 2))


if __name__ == "__main__":
    N, C, Cout, H, W = 4, 8, 8, 16, 16
    grid_size = (4, 4)
    S = grid_size[1] * grid_size[1]           # linear_transpose feature size

    key = jax.random.PRNGKey(0)
    ks = jax.random.split(key, 11)
    params = {
        "ln_g":   1.0 + 0.1 * jax.random.normal(ks[0], (C,), jnp.float32),
        "ln_b":   0.1 * jax.random.normal(ks[1], (C,), jnp.float32),
        "w_in":   jax.random.normal(ks[2], (C, 2 * C), jnp.float32) / math.sqrt(C),
        "b_in":   0.1 * jax.random.normal(ks[3], (2 * C,), jnp.float32),
        "w_t":    jax.random.normal(ks[4], (S, S), jnp.float32) / math.sqrt(S),
        "b_t":    0.1 * jax.random.normal(ks[5], (S,), jnp.float32),
        "w_out":  jax.random.normal(ks[6], (2 * C, C), jnp.float32) / math.sqrt(2 * C),
        "b_out":  0.1 * jax.random.normal(ks[7], (C,), jnp.float32),
        "w_conv": jax.random.normal(ks[8], (C, Cout), jnp.float32) / math.sqrt(C),
        "b_conv": 0.1 * jax.random.normal(ks[9], (Cout,), jnp.float32),
    }
    x = jax.random.normal(ks[10], (N, C, H, W), jnp.float32)

    ref = jax.block_until_ready(hit_reference(x, params, grid_size))

    # 1) exactness of the fusions / in-kernel math with f32 mixers (tight tol).
    out_f32 = jax.block_until_ready(
        hit_forward(x, params, grid_size, mixer_dtype=jnp.float32))
    assert out_f32.shape == (N, Cout, H, W)
    np.testing.assert_allclose(np.asarray(out_f32), np.asarray(ref),
                               rtol=1e-3, atol=1e-3)

    # 2) shipped fast path: bf16 mixer operands, f32 accumulation (looser tol:
    #    bf16 rounding of the mixer operands bounds the error at ~5e-3).
    out = jax.block_until_ready(hit_forward(x, params, grid_size))
    assert out.shape == (N, Cout, H, W)
    np.testing.assert_allclose(np.asarray(out), np.asarray(ref),
                               rtol=1e-2, atol=1e-2)
    print("KERNEL_OK")
</pallas_src>

<mosaic_0001>
module attributes {stable_mosaic.version = 11 : i64} {
  func.func @hit_kernel(%arg0: i32, %arg1: memref<2x8x256xf32, #tpu.memory_space<vmem>>, %arg2: memref<16x8xf32, #tpu.memory_space<vmem>>, %arg3: memref<16x1xf32, #tpu.memory_space<vmem>>, %arg4: memref<256x256xf32, #tpu.memory_space<vmem>>, %arg5: memref<1x256xf32, #tpu.memory_space<vmem>>, %arg6: memref<256x256xf32, #tpu.memory_space<vmem>>, %arg7: memref<1x256xf32, #tpu.memory_space<vmem>>, %arg8: memref<8x16xf32, #tpu.memory_space<vmem>>, %arg9: memref<8x1xf32, #tpu.memory_space<vmem>>, %arg10: memref<2x8x256xf32, #tpu.memory_space<vmem>>) attributes {dimension_semantics = [#tpu.dimension_semantics<parallel>], iteration_bounds = array<i64: 2>, scalar_prefetch = 0 : i64, scratch_operands = 0 : i64, tpu.core_type = #tpu.core_type<tc>, window_params = [{transform_indices = @transform_0, window_bounds = array<i64: 2, 8, 256>}, {pipeline_mode = #tpu.pipeline_mode<synchronous>, transform_indices = @transform_1, window_bounds = array<i64: 16, 8>}, {pipeline_mode = #tpu.pipeline_mode<synchronous>, transform_indices = @transform_2, window_bounds = array<i64: 16, 1>}, {pipeline_mode = #tpu.pipeline_mode<synchronous>, transform_indices = @transform_3, window_bounds = array<i64: 256, 256>}, {pipeline_mode = #tpu.pipeline_mode<synchronous>, transform_indices = @transform_4, window_bounds = array<i64: 1, 256>}, {pipeline_mode = #tpu.pipeline_mode<synchronous>, transform_indices = @transform_5, window_bounds = array<i64: 256, 256>}, {pipeline_mode = #tpu.pipeline_mode<synchronous>, transform_indices = @transform_6, window_bounds = array<i64: 1, 256>}, {pipeline_mode = #tpu.pipeline_mode<synchronous>, transform_indices = @transform_7, window_bounds = array<i64: 8, 16>}, {pipeline_mode = #tpu.pipeline_mode<synchronous>, transform_indices = @transform_8, window_bounds = array<i64: 8, 1>}, {transform_indices = @transform_9, window_bounds = array<i64: 2, 8, 256>}]} {
    %c0 = arith.constant 0 : index
    %c0_0 = arith.constant 0 : index
    %c0_1 = arith.constant 0 : index
    %0 = vector.load %arg1[%c0, %c0_0, %c0_1] : memref<2x8x256xf32, #tpu.memory_space<vmem>>, vector<2x8x256xf32>
    %cst = arith.constant dense<0.000000e+00> : vector<2x256xf32>
    %1 = vector.multi_reduction <add>, %0, %cst [1] : vector<2x8x256xf32> to vector<2x256xf32>
    %2 = vector.shape_cast %1 : vector<2x256xf32> to vector<2x1x256xf32>
    %cst_2 = arith.constant 8.000000e+00 : f32
    %3 = vector.broadcast %cst_2 : f32 to vector<2x1x256xf32>
    %4 = arith.divf %2, %3 : vector<2x1x256xf32>
    %5 = vector.broadcast %4 : vector<2x1x256xf32> to vector<2x8x256xf32>
    %6 = arith.subf %0, %5 : vector<2x8x256xf32>
    %7 = arith.mulf %6, %6 : vector<2x8x256xf32>
    %cst_3 = arith.constant dense<0.000000e+00> : vector<2x256xf32>
    %8 = vector.multi_reduction <add>, %7, %cst_3 [1] : vector<2x8x256xf32> to vector<2x256xf32>
    %9 = vector.shape_cast %8 : vector<2x256xf32> to vector<2x1x256xf32>
    %cst_4 = arith.constant 8.000000e+00 : f32
    %10 = vector.broadcast %cst_4 : f32 to vector<2x1x256xf32>
    %11 = arith.divf %9, %10 : vector<2x1x256xf32>
    %cst_5 = arith.constant 9.99999974E-6 : f32
    %12 = vector.broadcast %cst_5 : f32 to vector<2x1x256xf32>
    %13 = arith.addf %11, %12 : vector<2x1x256xf32>
    %14 = math.rsqrt %13 : vector<2x1x256xf32>
    %15 = vector.broadcast %14 : vector<2x1x256xf32> to vector<2x8x256xf32>
    %16 = arith.mulf %6, %15 : vector<2x8x256xf32>
    %c0_6 = arith.constant 0 : index
    %c0_7 = arith.constant 0 : index
    %17 = vector.load %arg2[%c0_6, %c0_7] : memref<16x8xf32, #tpu.memory_space<vmem>>, vector<16x8xf32>
    %c0_8 = arith.constant 0 : index
    %c0_9 = arith.constant 0 : index
    %18 = vector.load %arg3[%c0_8, %c0_9] : memref<16x1xf32, #tpu.memory_space<vmem>>, vector<16x1xf32>
    %19 = vector.extract_strided_slice %16 {offsets = [0, 0, 0], sizes = [1, 8, 256], strides = [1, 1, 1]} : vector<2x8x256xf32> to vector<1x8x256xf32>
    %20 = vector.shape_cast %19 : vector<1x8x256xf32> to vector<8x256xf32>
    %cst_10 = arith.constant dense<0.000000e+00> : vector<16x256xf32>
    %21 = tpu.matmul %17, %20, %cst_10 {dimension_numbers = #tpu.dot_dimension_numbers<[1], [0], [0], [1], [0, 0, 1, 1], [], []>} : vector<16x8xf32>, vector<8x256xf32>, vector<16x256xf32> -> vector<16x256xf32>
    %22 = vector.broadcast %18 : vector<16x1xf32> to vector<16x256xf32>
    %23 = arith.addf %21, %22 : vector<16x256xf32>
    %cst_11 = arith.constant 5.000000e-01 : f32
    %24 = vector.broadcast %cst_11 : f32 to vector<16x256xf32>
    %25 = arith.mulf %24, %23 : vector<16x256xf32>
    %cst_12 = arith.constant 0.707106769 : f32
    %26 = vector.broadcast %cst_12 : f32 to vector<16x256xf32>
    %27 = arith.mulf %23, %26 : vector<16x256xf32>
    %28 = math.absf %27 : vector<16x256xf32>
    %cst_13 = arith.constant 0.327591091 : f32
    %29 = vector.broadcast %cst_13 : f32 to vector<16x256xf32>
    %30 = arith.mulf %29, %28 : vector<16x256xf32>
    %cst_14 = arith.constant 1.000000e+00 : f32
    %31 = vector.broadcast %cst_14 : f32 to vector<16x256xf32>
    %32 = arith.addf %31, %30 : vector<16x256xf32>
    %cst_15 = arith.constant 1.000000e+00 : f32
    %33 = vector.broadcast %cst_15 : f32 to vector<16x256xf32>
    %34 = arith.divf %33, %32 : vector<16x256xf32>
    %cst_16 = arith.constant 1.06140542 : f32
    %35 = vector.broadcast %cst_16 : f32 to vector<16x256xf32>
    %36 = arith.mulf %35, %34 : vector<16x256xf32>
    %cst_17 = arith.constant -1.45315206 : f32
    %37 = vector.broadcast %cst_17 : f32 to vector<16x256xf32>
    %38 = arith.addf %36, %37 : vector<16x256xf32>
    %39 = arith.mulf %38, %34 : vector<16x256xf32>
    %cst_18 = arith.constant 1.42141378 : f32
    %40 = vector.broadcast %cst_18 : f32 to vector<16x256xf32>
    %41 = arith.addf %39, %40 : vector<16x256xf32>
    %42 = arith.mulf %41, %34 : vector<16x256xf32>
    %cst_19 = arith.constant -0.284496725 : f32
    %43 = vector.broadcast %cst_19 : f32 to vector<16x256xf32>
    %44 = arith.addf %42, %43 : vector<16x256xf32>
    %45 = arith.mulf %44, %34 : vector<16x256xf32>
    %cst_20 = arith.constant 0.254829586 : f32
    %46 = vector.broadcast %cst_20 : f32 to vector<16x256xf32>
    %47 = arith.addf %45, %46 : vector<16x256xf32>
    %48 = arith.mulf %47, %34 : vector<16x256xf32>
    %cst_21 = arith.constant 0.000000e+00 : f32
    %49 = vector.broadcast %cst_21 : f32 to vector<16x256xf32>
    %50 = arith.subf %49, %28 : vector<16x256xf32>
    %51 = arith.mulf %50, %28 : vector<16x256xf32>
    %52 = math.exp %51 : vector<16x256xf32>
    %53 = arith.mulf %48, %52 : vector<16x256xf32>
    %cst_22 = arith.constant 1.000000e+00 : f32
    %54 = vector.broadcast %cst_22 : f32 to vector<16x256xf32>
    %55 = arith.subf %54, %53 : vector<16x256xf32>
    %cst_23 = arith.constant 0.000000e+00 : f32
    %56 = vector.broadcast %cst_23 : f32 to vector<16x256xf32>
    %57 = arith.cmpf olt, %27, %56 : vector<16x256xf32>
    %cst_24 = arith.constant 0.000000e+00 : f32
    %58 = vector.broadcast %cst_24 : f32 to vector<16x256xf32>
    %59 = arith.subf %58, %55 : vector<16x256xf32>
    %60 = arith.select %57, %59, %55 : vector<16x256xi1>, vector<16x256xf32>
    %cst_25 = arith.constant 1.000000e+00 : f32
    %61 = vector.broadcast %cst_25 : f32 to vector<16x256xf32>
    %62 = arith.addf %61, %60 : vector<16x256xf32>
    %63 = arith.mulf %25, %62 : vector<16x256xf32>
    %64 = vector.extract_strided_slice %16 {offsets = [1, 0, 0], sizes = [1, 8, 256], strides = [1, 1, 1]} : vector<2x8x256xf32> to vector<1x8x256xf32>
    %65 = vector.shape_cast %64 : vector<1x8x256xf32> to vector<8x256xf32>
    %cst_26 = arith.constant dense<0.000000e+00> : vector<16x256xf32>
    %66 = tpu.matmul %17, %65, %cst_26 {dimension_numbers = #tpu.dot_dimension_numbers<[1], [0], [0], [1], [0, 0, 1, 1], [], []>} : vector<16x8xf32>, vector<8x256xf32>, vector<16x256xf32> -> vector<16x256xf32>
    %67 = vector.broadcast %18 : vector<16x1xf32> to vector<16x256xf32>
    %68 = arith.addf %66, %67 : vector<16x256xf32>
    %cst_27 = arith.constant 5.000000e-01 : f32
    %69 = vector.broadcast %cst_27 : f32 to vector<16x256xf32>
    %70 = arith.mulf %69, %68 : vector<16x256xf32>
    %cst_28 = arith.constant 0.707106769 : f32
    %71 = vector.broadcast %cst_28 : f32 to vector<16x256xf32>
    %72 = arith.mulf %68, %71 : vector<16x256xf32>
    %73 = math.absf %72 : vector<16x256xf32>
    %cst_29 = arith.constant 0.327591091 : f32
    %74 = vector.broadcast %cst_29 : f32 to vector<16x256xf32>
    %75 = arith.mulf %74, %73 : vector<16x256xf32>
    %cst_30 = arith.constant 1.000000e+00 : f32
    %76 = vector.broadcast %cst_30 : f32 to vector<16x256xf32>
    %77 = arith.addf %76, %75 : vector<16x256xf32>
    %cst_31 = arith.constant 1.000000e+00 : f32
    %78 = vector.broadcast %cst_31 : f32 to vector<16x256xf32>
    %79 = arith.divf %78, %77 : vector<16x256xf32>
    %cst_32 = arith.constant 1.06140542 : f32
    %80 = vector.broadcast %cst_32 : f32 to vector<16x256xf32>
    %81 = arith.mulf %80, %79 : vector<16x256xf32>
    %cst_33 = arith.constant -1.45315206 : f32
    %82 = vector.broadcast %cst_33 : f32 to vector<16x256xf32>
    %83 = arith.addf %81, %82 : vector<16x256xf32>
    %84 = arith.mulf %83, %79 : vector<16x256xf32>
    %cst_34 = arith.constant 1.42141378 : f32
    %85 = vector.broadcast %cst_34 : f32 to vector<16x256xf32>
    %86 = arith.addf %84, %85 : vector<16x256xf32>
    %87 = arith.mulf %86, %79 : vector<16x256xf32>
    %cst_35 = arith.constant -0.284496725 : f32
    %88 = vector.broadcast %cst_35 : f32 to vector<16x256xf32>
    %89 = arith.addf %87, %88 : vector<16x256xf32>
    %90 = arith.mulf %89, %79 : vector<16x256xf32>
    %cst_36 = arith.constant 0.254829586 : f32
    %91 = vector.broadcast %cst_36 : f32 to vector<16x256xf32>
    %92 = arith.addf %90, %91 : vector<16x256xf32>
    %93 = arith.mulf %92, %79 : vector<16x256xf32>
    %cst_37 = arith.constant 0.000000e+00 : f32
    %94 = vector.broadcast %cst_37 : f32 to vector<16x256xf32>
    %95 = arith.subf %94, %73 : vector<16x256xf32>
    %96 = arith.mulf %95, %73 : vector<16x256xf32>
    %97 = math.exp %96 : vector<16x256xf32>
    %98 = arith.mulf %93, %97 : vector<16x256xf32>
    %cst_38 = arith.constant 1.000000e+00 : f32
    %99 = vector.broadcast %cst_38 : f32 to vector<16x256xf32>
    %100 = arith.subf %99, %98 : vector<16x256xf32>
    %cst_39 = arith.constant 0.000000e+00 : f32
    %101 = vector.broadcast %cst_39 : f32 to vector<16x256xf32>
    %102 = arith.cmpf olt, %72, %101 : vector<16x256xf32>
    %cst_40 = arith.constant 0.000000e+00 : f32
    %103 = vector.broadcast %cst_40 : f32 to vector<16x256xf32>
    %104 = arith.subf %103, %100 : vector<16x256xf32>
    %105 = arith.select %102, %104, %100 : vector<16x256xi1>, vector<16x256xf32>
    %cst_41 = arith.constant 1.000000e+00 : f32
    %106 = vector.broadcast %cst_41 : f32 to vector<16x256xf32>
    %107 = arith.addf %106, %105 : vector<16x256xf32>
    %108 = arith.mulf %70, %107 : vector<16x256xf32>
    %109 = vector.extract_strided_slice %63 {offsets = [0, 0], sizes = [8, 256], strides = [1, 1]} : vector<16x256xf32> to vector<8x256xf32>
    %110 = vector.extract_strided_slice %108 {offsets = [0, 0], sizes = [8, 256], strides = [1, 1]} : vector<16x256xf32> to vector<8x256xf32>
    %111 = tpu.concatenate %109, %110 in 0 : vector<8x256xf32>, vector<8x256xf32> -> vector<16x256xf32>
    %112 = vector.extract_strided_slice %63 {offsets = [8, 0], sizes = [8, 256], strides = [1, 1]} : vector<16x256xf32> to vector<8x256xf32>
    %113 = vector.extract_strided_slice %108 {offsets = [8, 0], sizes = [8, 256], strides = [1, 1]} : vector<16x256xf32> to vector<8x256xf32>
    %114 = tpu.concatenate %112, %113 in 0 : vector<8x256xf32>, vector<8x256xf32> -> vector<16x256xf32>
    %c0_42 = arith.constant 0 : index
    %c0_43 = arith.constant 0 : index
    %115 = vector.load %arg4[%c0_42, %c0_43] : memref<256x256xf32, #tpu.memory_space<vmem>>, vector<256x256xf32>
    %c0_44 = arith.constant 0 : index
    %c0_45 = arith.constant 0 : index
    %116 = vector.load %arg6[%c0_44, %c0_45] : memref<256x256xf32, #tpu.memory_space<vmem>>, vector<256x256xf32>
    %cst_46 = arith.constant dense<0.000000e+00> : vector<16x256xf32>
    %117 = tpu.matmul %111, %115, %cst_46 {dimension_numbers = #tpu.dot_dimension_numbers<[1], [0], [0], [1], [0, 0, 1, 1], [], []>} : vector<16x256xf32>, vector<256x256xf32>, vector<16x256xf32> -> vector<16x256xf32>
    %c0_47 = arith.constant 0 : index
    %c0_48 = arith.constant 0 : index
    %118 = vector.load %arg5[%c0_47, %c0_48] : memref<1x256xf32, #tpu.memory_space<vmem>>, vector<1x256xf32>
    %119 = vector.broadcast %118 : vector<1x256xf32> to vector<16x256xf32>
    %120 = arith.addf %117, %119 : vector<16x256xf32>
    %cst_49 = arith.constant dense<0.000000e+00> : vector<16x256xf32>
    %121 = tpu.matmul %114, %116, %cst_49 {dimension_numbers = #tpu.dot_dimension_numbers<[1], [0], [0], [1], [0, 0, 1, 1], [], []>} : vector<16x256xf32>, vector<256x256xf32>, vector<16x256xf32> -> vector<16x256xf32>
    %c0_50 = arith.constant 0 : index
    %c0_51 = arith.constant 0 : index
    %122 = vector.load %arg7[%c0_50, %c0_51] : memref<1x256xf32, #tpu.memory_space<vmem>>, vector<1x256xf32>
    %123 = vector.broadcast %122 : vector<1x256xf32> to vector<16x256xf32>
    %124 = arith.addf %121, %123 : vector<16x256xf32>
    %c0_52 = arith.constant 0 : index
    %c0_53 = arith.constant 0 : index
    %125 = vector.load %arg8[%c0_52, %c0_53] : memref<8x16xf32, #tpu.memory_space<vmem>>, vector<8x16xf32>
    %c0_54 = arith.constant 0 : index
    %c0_55 = arith.constant 0 : index
    %126 = vector.load %arg9[%c0_54, %c0_55] : memref<8x1xf32, #tpu.memory_space<vmem>>, vector<8x1xf32>
    %127 = vector.extract_strided_slice %120 {offsets = [0, 0], sizes = [8, 256], strides = [1, 1]} : vector<16x256xf32> to vector<8x256xf32>
    %128 = vector.extract_strided_slice %124 {offsets = [0, 0], sizes = [8, 256], strides = [1, 1]} : vector<16x256xf32> to vector<8x256xf32>
    %129 = tpu.concatenate %127, %128 in 0 : vector<8x256xf32>, vector<8x256xf32> -> vector<16x256xf32>
    %cst_56 = arith.constant dense<0.000000e+00> : vector<8x256xf32>
    %130 = tpu.matmul %125, %129, %cst_56 {dimension_numbers = #tpu.dot_dimension_numbers<[1], [0], [0], [1], [0, 0, 1, 1], [], []>} : vector<8x16xf32>, vector<16x256xf32>, vector<8x256xf32> -> vector<8x256xf32>
    %131 = vector.broadcast %126 : vector<8x1xf32> to vector<8x256xf32>
    %132 = arith.addf %130, %131 : vector<8x256xf32>
    %c0_57 = arith.constant 0 : index
    %c0_58 = arith.constant 0 : index
    %c0_59 = arith.constant 0 : index
    %133 = vector.load %arg10[%c0_57, %c0_58, %c0_59] : memref<2x8x256xf32, #tpu.memory_space<vmem>>, vector<1x8x256xf32>
    %134 = vector.shape_cast %133 : vector<1x8x256xf32> to vector<8x256xf32>
    %135 = vector.shape_cast %132 : vector<8x256xf32> to vector<1x8x256xf32>
    tpu.vector_store %arg10[%c0_57, %c0_58, %c0_59], %135 {strides = array<i32>} : memref<2x8x256xf32, #tpu.memory_space<vmem>>, vector<1x8x256xf32>,
    %136 = vector.extract_strided_slice %120 {offsets = [8, 0], sizes = [8, 256], strides = [1, 1]} : vector<16x256xf32> to vector<8x256xf32>
    %137 = vector.extract_strided_slice %124 {offsets = [8, 0], sizes = [8, 256], strides = [1, 1]} : vector<16x256xf32> to vector<8x256xf32>
    %138 = tpu.concatenate %136, %137 in 0 : vector<8x256xf32>, vector<8x256xf32> -> vector<16x256xf32>
    %cst_60 = arith.constant dense<0.000000e+00> : vector<8x256xf32>
    %139 = tpu.matmul %125, %138, %cst_60 {dimension_numbers = #tpu.dot_dimension_numbers<[1], [0], [0], [1], [0, 0, 1, 1], [], []>} : vector<8x16xf32>, vector<16x256xf32>, vector<8x256xf32> -> vector<8x256xf32>
    %140 = vector.broadcast %126 : vector<8x1xf32> to vector<8x256xf32>
    %141 = arith.addf %139, %140 : vector<8x256xf32>
    %c1 = arith.constant 1 : index
    %c0_61 = arith.constant 0 : index
    %c0_62 = arith.constant 0 : index
    %142 = vector.load %arg10[%c1, %c0_61, %c0_62] : memref<2x8x256xf32, #tpu.memory_space<vmem>>, vector<1x8x256xf32>
    %143 = vector.shape_cast %142 : vector<1x8x256xf32> to vector<8x256xf32>
    %144 = vector.shape_cast %141 : vector<8x256xf32> to vector<1x8x256xf32>
    tpu.vector_store %arg10[%c1, %c0_61, %c0_62], %144 {strides = array<i32>} : memref<2x8x256xf32, #tpu.memory_space<vmem>>, vector<1x8x256xf32>,
    return
  }
  func.func @transform_0(%arg0: i32) -> (i32, i32, i32) {
    %c0_i32 = arith.constant 0 : i32
    %c0_i32_0 = arith.constant 0 : i32
    %c0_i32_1 = arith.constant 0 : i32
    return %arg0, %c0_i32, %c0_i32_0 : i32, i32, i32
  }
  func.func @transform_1(%arg0: i32) -> (i32, i32) {
    %c0_i32 = arith.constant 0 : i32
    %c0_i32_0 = arith.constant 0 : i32
    %c0_i32_1 = arith.constant 0 : i32
    return %c0_i32, %c0_i32_0 : i32, i32
  }
  func.func @transform_2(%arg0: i32) -> (i32, i32) {
    %c0_i32 = arith.constant 0 : i32
    %c0_i32_0 = arith.constant 0 : i32
    %c0_i32_1 = arith.constant 0 : i32
    return %c0_i32, %c0_i32_0 : i32, i32
  }
  func.func @transform_3(%arg0: i32) -> (i32, i32) {
    %c0_i32 = arith.constant 0 : i32
    %c0_i32_0 = arith.constant 0 : i32
    %c0_i32_1 = arith.constant 0 : i32
    return %c0_i32, %c0_i32_0 : i32, i32
  }
  func.func @transform_4(%arg0: i32) -> (i32, i32) {
    %c0_i32 = arith.constant 0 : i32
    %c0_i32_0 = arith.constant 0 : i32
    %c0_i32_1 = arith.constant 0 : i32
    return %c0_i32, %c0_i32_0 : i32, i32
  }
  func.func @transform_5(%arg0: i32) -> (i32, i32) {
    %c0_i32 = arith.constant 0 : i32
    %c0_i32_0 = arith.constant 0 : i32
    %c0_i32_1 = arith.constant 0 : i32
    return %c0_i32, %c0_i32_0 : i32, i32
  }
  func.func @transform_6(%arg0: i32) -> (i32, i32) {
    %c0_i32 = arith.constant 0 : i32
    %c0_i32_0 = arith.constant 0 : i32
    %c0_i32_1 = arith.constant 0 : i32
    return %c0_i32, %c0_i32_0 : i32, i32
  }
  func.func @transform_7(%arg0: i32) -> (i32, i32) {
    %c0_i32 = arith.constant 0 : i32
    %c0_i32_0 = arith.constant 0 : i32
    %c0_i32_1 = arith.constant 0 : i32
    return %c0_i32, %c0_i32_0 : i32, i32
  }
  func.func @transform_8(%arg0: i32) -> (i32, i32) {
    %c0_i32 = arith.constant 0 : i32
    %c0_i32_0 = arith.constant 0 : i32
    %c0_i32_1 = arith.constant 0 : i32
    return %c0_i32, %c0_i32_0 : i32, i32
  }
  func.func @transform_9(%arg0: i32) -> (i32, i32, i32) {
    %c0_i32 = arith.constant 0 : i32
    %c0_i32_0 = arith.constant 0 : i32
    %c0_i32_1 = arith.constant 0 : i32
    return %arg0, %c0_i32, %c0_i32_0 : i32, i32, i32
  }
}

</mosaic_0001>

<llo_original>
// kernel: tpu_custom_call.1
$region0: #{tpu_custom_call.1}
  #allocation0 [shape = 'u32[]', space=smem, size = 0x4, offset = 0x4, fixed_abs, tag = 'smem constant byte address 0x4 - core index']
  #allocation1 [shape = 'u32[144,128]{1,0:T(1,128)}', space=vmem, size = 0x12000, scoped, tag = 'internal scratch']
  %s0 = inlined_call_operand.hbm [shape: f32[4,8,256], index: 0, kind: input, shape index: {}]
  %s1 = inlined_call_operand.vmem [shape: f32[16,8], index: 1, kind: input, shape index: {}]
  %s2 = inlined_call_operand.vmem [shape: f32[16,1], index: 2, kind: input, shape index: {}]
  %s3 = inlined_call_operand.hbm [shape: f32[256,256], index: 3, kind: input, shape index: {}]
  %s4 = inlined_call_operand.vmem [shape: f32[1,256], index: 4, kind: input, shape index: {}]
  %s5 = inlined_call_operand.hbm [shape: f32[256,256], index: 5, kind: input, shape index: {}]
  %s6 = inlined_call_operand.vmem [shape: f32[1,256], index: 6, kind: input, shape index: {}]
  %s7 = inlined_call_operand.vmem [shape: f32[8,16], index: 7, kind: input, shape index: {}]
  %s8 = inlined_call_operand.vmem [shape: f32[8,1], index: 8, kind: input, shape index: {}]
  %s9 = inlined_call_operand.hbm [shape: f32[4,8,256], index: 9, kind: output, shape index: {}]
  %s10 = sld [smem:[#allocation0]]
  $region81: #{tpu_custom_call.1} parent=0
    _
  %s12 = ssub.s32 1, %s10
  %s13 = scalar_select 0, %s12, %s10
  $region1: #{tpu_custom_call.1} parent=0
    #allocation2 [shape = 'u8[32768]{0}', space=vmem, size = 0x8000, scoped, tag = 'input window, operand 0']
    #allocation3 [shape = 's32[2]{0}', space=sflag, size = 0x8, scoped, tag = 'scoped memory for tpu_custom_call.1']
    #allocation4 [shape = 's32[2]{0}', space=sflag, size = 0x8, scoped, tag = 'scoped memory for tpu_custom_call.1']
    #allocation5 [shape = 'u8[262144]{0}', space=vmem, size = 0x40000, scoped, tag = 'input window, operand 3, single buffered']
    #allocation6 [shape = 's32[1]{0}', space=sflag, size = 0x4, scoped, tag = 'scoped memory for tpu_custom_call.1']
    #allocation7 [shape = 'u8[262144]{0}', space=vmem, size = 0x40000, scoped, tag = 'input window, operand 5, single buffered']
    #allocation8 [shape = 'u8[32768]{0}', space=vmem, size = 0x8000, scoped, tag = 'output window, operand 0']
    %14 = vsyncpa [#allocation3], 0
    %s15 = scalar_lea.sflag [#allocation3], 1
    %16 = vsyncpa %s15, 0
    %17 = vsyncpa [#allocation6], 0
    %18 = vsyncpa [#allocation4], 0
    %s19 = scalar_lea.sflag [#allocation4], 1
    %20 = vsyncpa %s19, 0
    loop: start=0, step=1, limit=4
    $region2: #{tpu_custom_call.1} parent=1 // loop_pre_header
      _
    $region3: #{tpu_custom_call.1} parent=1 // loop_header
      %s22 = sphi 0, %s26
      %p23 = scmp.ge.s32.totalorder %s22, 4
      %s32 = sphi 0, %s34
      %s35 = sphi 0, %s32
      %s36 = sphi 0, %s35
      %s52 = sphi 0, %s36
      %s56 = sphi 0, %s56
      %s58 = sphi 0, %s56
      %s59 = sphi 0, %s58
      %s73 = sphi 0, %s59
      %s77 = sphi 0, %s77
      %s79 = sphi 0, %s77
      %s80 = sphi 0, %s79
      %s94 = sphi 0, %s80
      %s98 = sphi 0, %s98
      %s100 = sphi 0, %s98
      %s101 = sphi 0, %s100
      %s115 = sphi 0, %s101
      %s119 = sphi 0, %s119
      %s121 = sphi 0, %s119
      %s122 = sphi 0, %s121
      %s136 = sphi 0, %s122
      %s140 = sphi 0, %s140
      %s142 = sphi 0, %s140
      %s143 = sphi 0, %s142
      %s157 = sphi 0, %s143
      %s161 = sphi 0, %s161
      %s163 = sphi 0, %s161
      %s164 = sphi 0, %s163
      %s178 = sphi 0, %s164
      %s182 = sphi 0, %s182
      %s184 = sphi 0, %s182
      %s185 = sphi 0, %s184
      %s199 = sphi 0, %s185
      %s203 = sphi 0, %s203
      %s205 = sphi 0, %s203
      %s206 = sphi 0, %s205
      %s220 = sphi 0, %s206
      %s226 = sphi 0, %s228
      %s229 = sphi 0, %s226
      %s230 = sphi 0, %s229
      %s246 = sphi 0, %s230
    $region4: #{tpu_custom_call.1} parent=1 // loop_header_branch
      %25 = sbr.rel (%p23) target = $region8
    $region5: #{tpu_custom_call.1} parent=1 // loop_body
      %s27 = ssub.s32 %s22, 1
      %s28 = ssub.s32 %s22, 2
      %s29 = sadd.s32 %s22, 1
      %s30 = ssub.s32 %s22, %s29
      %p31 = scmp.eq.s32.totalorder %s30, 0
      %s33 = sadd.s32 %s32, 1
      %s34 = scalar_select %p31, %s32, %s33
      %p37 = pneg %p31
      %p38 = scmp.eq.s32.totalorder %s22, 1
      %p39 = por %p37, %p38
      %p40 = scmp.ne.s32.totalorder %s32, %s35
      %p41 = scmp.eq.s32.totalorder %s22, 0
      %p42 = por %p40, %p41
      %p43 = scmp.ne.s32.totalorder %s32, %s35
      %p44 = scmp.eq.s32.totalorder %s27, 1
      %p45 = por %p43, %p44
      %p46 = scmp.ne.s32.totalorder %s35, %s36
      %p47 = scmp.eq.s32.totalorder %s27, 0
      %p48 = por %p46, %p47
      %p49 = scmp.ne.s32.totalorder %s35, %s36
      %p50 = scmp.eq.s32.totalorder %s28, 1
      %p51 = por %p49, %p50
      %p53 = scmp.ne.s32.totalorder %s36, %s52
      %p54 = scmp.eq.s32.totalorder %s28, 0
      %p55 = por %p53, %p54
      %s57 = sadd.s32 %s56, 1
      %p60 = scmp.eq.s32.totalorder %s22, 1
      %p61 = scmp.ne.s32.totalorder %s56, %s58
      %p62 = scmp.eq.s32.totalorder %s22, 0
      %p63 = por %p61, %p62
      %p64 = scmp.ne.s32.totalorder %s56, %s58
      %p65 = scmp.eq.s32.totalorder %s27, 1
      %p66 = por %p64, %p65
      %p67 = scmp.ne.s32.totalorder %s58, %s59
      %p68 = scmp.eq.s32.totalorder %s27, 0
      %p69 = por %p67, %p68
      %p70 = scmp.ne.s32.totalorder %s58, %s59
      %p71 = scmp.eq.s32.totalorder %s28, 1
      %p72 = por %p70, %p71
      %p74 = scmp.ne.s32.totalorder %s59, %s73
      %p75 = scmp.eq.s32.totalorder %s28, 0
      %p76 = por %p74, %p75
      %s78 = sadd.s32 %s77, 1
      %p81 = scmp.eq.s32.totalorder %s22, 1
      %p82 = scmp.ne.s32.totalorder %s77, %s79
      %p83 = scmp.eq.s32.totalorder %s22, 0
      %p84 = por %p82, %p83
      %p85 = scmp.ne.s32.totalorder %s77, %s79
      %p86 = scmp.eq.s32.totalorder %s27, 1
      %p87 = por %p85, %p86
      %p88 = scmp.ne.s32.totalorder %s79, %s80
      %p89 = scmp.eq.s32.totalorder %s27, 0
      %p90 = por %p88, %p89
      %p91 = scmp.ne.s32.totalorder %s79, %s80
      %p92 = scmp.eq.s32.totalorder %s28, 1
      %p93 = por %p91, %p92
      %p95 = scmp.ne.s32.totalorder %s80, %s94
      %p96 = scmp.eq.s32.totalorder %s28, 0
      %p97 = por %p95, %p96
      %s99 = sadd.s32 %s98, 1
      %p102 = scmp.eq.s32.totalorder %s22, 1
      %p103 = scmp.ne.s32.totalorder %s98, %s100
      %p104 = scmp.eq.s32.totalorder %s22, 0
      %p105 = por %p103, %p104
      %p106 = scmp.ne.s32.totalorder %s98, %s100
      %p107 = scmp.eq.s32.totalorder %s27, 1
      %p108 = por %p106, %p107
      %p109 = scmp.ne.s32.totalorder %s100, %s101
      %p110 = scmp.eq.s32.totalorder %s27, 0
      %p111 = por %p109, %p110
      %p112 = scmp.ne.s32.totalorder %s100, %s101
      %p113 = scmp.eq.s32.totalorder %s28, 1
      %p114 = por %p112, %p113
      %p116 = scmp.ne.s32.totalorder %s101, %s115
      %p117 = scmp.eq.s32.totalorder %s28, 0
      %p118 = por %p116, %p117
      %s120 = sadd.s32 %s119, 1
      %p123 = scmp.eq.s32.totalorder %s22, 1
      %p124 = scmp.ne.s32.totalorder %s119, %s121
      %p125 = scmp.eq.s32.totalorder %s22, 0
      %p126 = por %p124, %p125
      %p127 = scmp.ne.s32.totalorder %s119, %s121
      %p128 = scmp.eq.s32.totalorder %s27, 1
      %p129 = por %p127, %p128
      %p130 = scmp.ne.s32.totalorder %s121, %s122
      %p131 = scmp.eq.s32.totalorder %s27, 0
      %p132 = por %p130, %p131
      %p133 = scmp.ne.s32.totalorder %s121, %s122
      %p134 = scmp.eq.s32.totalorder %s28, 1
      %p135 = por %p133, %p134
      %p137 = scmp.ne.s32.totalorder %s122, %s136
      %p138 = scmp.eq.s32.totalorder %s28, 0
      %p139 = por %p137, %p138
      %s141 = sadd.s32 %s140, 1
      %p144 = scmp.eq.s32.totalorder %s22, 1
      %p145 = scmp.ne.s32.totalorder %s140, %s142
      %p146 = scmp.eq.s32.totalorder %s22, 0
      %p147 = por %p145, %p146
      %p148 = scmp.ne.s32.totalorder %s140, %s142
      %p149 = scmp.eq.s32.totalorder %s27, 1
      %p150 = por %p148, %p149
      %p151 = scmp.ne.s32.totalorder %s142, %s143
      %p152 = scmp.eq.s32.totalorder %s27, 0
      %p153 = por %p151, %p152
      %p154 = scmp.ne.s32.totalorder %s142, %s143
      %p155 = scmp.eq.s32.totalorder %s28, 1
      %p156 = por %p154, %p155
      %p158 = scmp.ne.s32.totalorder %s143, %s157
      %p159 = scmp.eq.s32.totalorder %s28, 0
      %p160 = por %p158, %p159
      %s162 = sadd.s32 %s161, 1
      %p165 = scmp.eq.s32.totalorder %s22, 1
      %p166 = scmp.ne.s32.totalorder %s161, %s163
      %p167 = scmp.eq.s32.totalorder %s22, 0
      %p168 = por %p166, %p167
      %p169 = scmp.ne.s32.totalorder %s161, %s163
      %p170 = scmp.eq.s32.totalorder %s27, 1
      %p171 = por %p169, %p170
      %p172 = scmp.ne.s32.totalorder %s163, %s164
      %p173 = scmp.eq.s32.totalorder %s27, 0
      %p174 = por %p172, %p173
      %p175 = scmp.ne.s32.totalorder %s163, %s164
      %p176 = scmp.eq.s32.totalorder %s28, 1
      %p177 = por %p175, %p176
      %p179 = scmp.ne.s32.totalorder %s164, %s178
      %p180 = scmp.eq.s32.totalorder %s28, 0
      %p181 = por %p179, %p180
      %s183 = sadd.s32 %s182, 1
      %p186 = scmp.eq.s32.totalorder %s22, 1
      %p187 = scmp.ne.s32.totalorder %s182, %s184
      %p188 = scmp.eq.s32.totalorder %s22, 0
      %p189 = por %p187, %p188
      %p190 = scmp.ne.s32.totalorder %s182, %s184
      %p191 = scmp.eq.s32.totalorder %s27, 1
      %p192 = por %p190, %p191
      %p193 = scmp.ne.s32.totalorder %s184, %s185
      %p194 = scmp.eq.s32.totalorder %s27, 0
      %p195 = por %p193, %p194
      %p196 = scmp.ne.s32.totalorder %s184, %s185
      %p197 = scmp.eq.s32.totalorder %s28, 1
      %p198 = por %p196, %p197
      %p200 = scmp.ne.s32.totalorder %s185, %s199
      %p201 = scmp.eq.s32.totalorder %s28, 0
      %p202 = por %p200, %p201
      %s204 = sadd.s32 %s203, 1
      %p207 = scmp.eq.s32.totalorder %s22, 1
      %p208 = scmp.ne.s32.totalorder %s203, %s205
      %p209 = scmp.eq.s32.totalorder %s22, 0
      %p210 = por %p208, %p209
      %p211 = scmp.ne.s32.totalorder %s203, %s205
      %p212 = scmp.eq.s32.totalorder %s27, 1
      %p213 = por %p211, %p212
      %p214 = scmp.ne.s32.totalorder %s205, %s206
      %p215 = scmp.eq.s32.totalorder %s27, 0
      %p216 = por %p214, %p215
      %p217 = scmp.ne.s32.totalorder %s205, %s206
      %p218 = scmp.eq.s32.totalorder %s28, 1
      %p219 = por %p217, %p218
      %p221 = scmp.ne.s32.totalorder %s206, %s220
      %p222 = scmp.eq.s32.totalorder %s28, 0
      %p223 = por %p221, %p222
      %s224 = ssub.s32 %s22, %s29
      %p225 = scmp.eq.s32.totalorder %s224, 0
      %s227 = sadd.s32 %s226, 1
      %s228 = scalar_select %p225, %s226, %s227
      %p231 = pneg %p225
      %p232 = scmp.eq.s32.totalorder %s22, 1
      %p233 = por %p231, %p232
      %p234 = scmp.ne.s32.totalorder %s226, %s229
      %p235 = scmp.eq.s32.totalorder %s22, 0
      %p236 = por %p234, %p235
      %p237 = scmp.ne.s32.totalorder %s226, %s229
      %p238 = scmp.eq.s32.totalorder %s27, 1
      %p239 = por %p237, %p238
      %p240 = scmp.ne.s32.totalorder %s229, %s230
      %p241 = scmp.eq.s32.totalorder %s27, 0
      %p242 = por %p240, %p241
      %p243 = scmp.ne.s32.totalorder %s229, %s230
      %p244 = scmp.eq.s32.totalorder %s28, 1
      %p245 = por %p243, %p244
      %p247 = scmp.ne.s32.totalorder %s230, %s246
      %p248 = scmp.eq.s32.totalorder %s28, 0
      %p249 = por %p247, %p248
      %p250 = scmp.le.s32.totalorder 1, %s22
      %p251 = scmp.lt.s32.totalorder %s22, 3
      %p252 = pnand %p250, %p251
      %p253 = pneg %p252
      // Predicated region
      $region9: #{tpu_custom_call.1} parent=5 // pred_check
        _
      $region10: #{tpu_custom_call.1} parent=5 // pred_check_branch
        %255 = sbr.rel (%p252) target = $region12
      $region11: #{tpu_custom_call.1} parent=5 // pred_region
        %s256 = ssub.s32 %s22, 1
        // Predicated region
        $region13: #{tpu_custom_call.1} parent=11 // pred_check
          %p257 = pneg %p69
        $region14: #{tpu_custom_call.1} parent=11 // pred_check_branch
          %259 = sbr.rel (%p257) target = $region16
        $region15: #{tpu_custom_call.1} parent=11 // pred_region
          _
        $region16: #{tpu_custom_call.1} parent=11 // pred_fallthru
          _
        // Predicated region
        $region17: #{tpu_custom_call.1} parent=11 // pred_check
          %p260 = pneg %p90
        $region18: #{tpu_custom_call.1} parent=11 // pred_check_branch
          %262 = sbr.rel (%p260) target = $region20
        $region19: #{tpu_custom_call.1} parent=11 // pred_region
          _
        $region20: #{tpu_custom_call.1} parent=11 // pred_fallthru
          _
        // Predicated region
        $region21: #{tpu_custom_call.1} parent=11 // pred_check
          %p263 = pneg %p111
        $region22: #{tpu_custom_call.1} parent=11 // pred_check_branch
          %265 = sbr.rel (%p263) target = $region24
        $region23: #{tpu_custom_call.1} parent=11 // pred_region
          %s267 = ssub.s32 8192, 8192
          %268 = vsyncadd [#allocation6], %s267
          %s269 = sshll.u32 [#allocation5], 4
          %s270 = int_to_ptr.vmem [resolvable:$true] %s269
          %275 = dma.hbm_to_vmem [thread:$0]  %s3, 8192, %s270, [#allocation6], 256, 256, 16
        $region24: #{tpu_custom_call.1} parent=11 // pred_fallthru
          _
        // Predicated region
        $region25: #{tpu_custom_call.1} parent=11 // pred_check
          %p276 = pneg %p132
        $region26: #{tpu_custom_call.1} parent=11 // pred_check_branch
          %278 = sbr.rel (%p276) target = $region28
        $region27: #{tpu_custom_call.1} parent=11 // pred_region
          _
        $region28: #{tpu_custom_call.1} parent=11 // pred_fallthru
          _
        // Predicated region
        $region29: #{tpu_custom_call.1} parent=11 // pred_check
          %p279 = pneg %p153
        $region30: #{tpu_custom_call.1} parent=11 // pred_check_branch
          %281 = sbr.rel (%p279) target = $region32
        $region31: #{tpu_custom_call.1} parent=11 // pred_region
          %s283 = ssub.s32 8192, 8192
          %284 = vsyncadd [#allocation6], %s283
          %s285 = sshll.u32 [#allocation7], 4
          %s286 = int_to_ptr.vmem [resolvable:$true] %s285
          %291 = dma.hbm_to_vmem [thread:$0]  %s5, 8192, %s286, [#allocation6], 256, 256, 16
        $region32: #{tpu_custom_call.1} parent=11 // pred_fallthru
          _
        // Predicated region
        $region33: #{tpu_custom_call.1} parent=11 // pred_check
          %p292 = pneg %p174
        $region34: #{tpu_custom_call.1} parent=11 // pred_check_branch
          %294 = sbr.rel (%p292) target = $region36
        $region35: #{tpu_custom_call.1} parent=11 // pred_region
          _
        $region36: #{tpu_custom_call.1} parent=11 // pred_fallthru
          _
        // Predicated region
        $region37: #{tpu_custom_call.1} parent=11 // pred_check
          %p295 = pneg %p195
        $region38: #{tpu_custom_call.1} parent=11 // pred_check_branch
          %297 = sbr.rel (%p295) target = $region40
        $region39: #{tpu_custom_call.1} parent=11 // pred_region
          _
        $region40: #{tpu_custom_call.1} parent=11 // pred_fallthru
          _
        // Predicated region
        $region41: #{tpu_custom_call.1} parent=11 // pred_check
          %p298 = pneg %p216
        $region42: #{tpu_custom_call.1} parent=11 // pred_check_branch
          %300 = sbr.rel (%p298) target = $region44
        $region43: #{tpu_custom_call.1} parent=11 // pred_region
          _
        $region44: #{tpu_custom_call.1} parent=11 // pred_fallthru
          _
      $region12: #{tpu_custom_call.1} parent=5 // pred_fallthru
        _
      %p301 = scmp.lt.s32.totalorder %s22, 2
      // Predicated region
      $region45: #{tpu_custom_call.1} parent=5 // pred_check
        %p302 = pneg %p301
      $region46: #{tpu_custom_call.1} parent=5 // pred_check_branch
        %304 = sbr.rel (%p302) target = $region48
      $region47: #{tpu_custom_call.1} parent=5 // pred_region
        // Predicated region
        $region49: #{tpu_custom_call.1} parent=47 // pred_check
          %p305 = pneg %p42
        $region50: #{tpu_custom_call.1} parent=47 // pred_check_branch
          %307 = sbr.rel (%p305) target = $region52
        $region51: #{tpu_custom_call.1} parent=47 // pred_region
          %s308 = sand.u32 %s32, 1
          %s309 = scalar_lea.sflag [#allocation3], %s308
          %s310 = sand.u32 %s32, 1
          %s311 = smul.addr %s310, 32
          %s312 = scalar_lea.vmem [#allocation2], %s311
          %s313 = smul.u32 2, %s22
          %s315 = ssub.s32 512, 512
          %316 = vsyncadd %s309, %s315
          %s317 = smul.addr %s313, 2
          %s318 = smul.addr %s317, 128
          %s319 = scalar_lea.hbm %s0, %s318
          %s320 = sshll.u32 %s312, 4
          %s321 = int_to_ptr.vmem [resolvable:$true] %s320
          %326 = dma.hbm_to_vmem [thread:$0]  %s319, 512, %s321, %s309, 256, 256, 16
        $region52: #{tpu_custom_call.1} parent=47 // pred_fallthru
          _
      $region48: #{tpu_custom_call.1} parent=5 // pred_fallthru
        _
      %p327 = scmp.le.s32.totalorder 1, %s22
      %p328 = scmp.lt.s32.totalorder %s22, 3
      %p329 = pnand %p327, %p328
      %p330 = pneg %p329
      // Predicated region
      $region53: #{tpu_custom_call.1} parent=5 // pred_check
        _
      $region54: #{tpu_custom_call.1} parent=5 // pred_check_branch
        %332 = sbr.rel (%p329) target = $region56
      $region55: #{tpu_custom_call.1} parent=5 // pred_region
        %s333 = ssub.s32 %s22, 1
        %s334 = sand.u32 %s35, 1
        %s335 = scalar_lea.sflag [#allocation3], %s334
        %s336 = sand.u32 %s35, 1
        %s337 = smul.addr %s336, 32
        %s338 = scalar_lea.vmem [#allocation2], %s337
        // Predicated region
        $region57: #{tpu_custom_call.1} parent=55 // pred_check
          %p339 = pneg %p48
        $region58: #{tpu_custom_call.1} parent=55 // pred_check_branch
          %341 = sbr.rel (%p339) target = $region60
        $region59: #{tpu_custom_call.1} parent=55 // pred_region
          %342 = dma.done %s335, 512
        $region60: #{tpu_custom_call.1} parent=55 // pred_fallthru
          _
        // Predicated region
        $region61: #{tpu_custom_call.1} parent=55 // pred_check
          %p343 = pneg %p111
        $region62: #{tpu_custom_call.1} parent=55 // pred_check_branch
          %345 = sbr.rel (%p343) target = $region64
        $region63: #{tpu_custom_call.1} parent=55 // pred_region
          %346 = dma.done [#allocation6], 8192
        $region64: #{tpu_custom_call.1} parent=55 // pred_fallthru
          _
        // Predicated region
        $region65: #{tpu_custom_call.1} parent=55 // pred_check
          %p347 = pneg %p153
        $region66: #{tpu_custom_call.1} parent=55 // pred_check_branch
          %349 = sbr.rel (%p347) target = $region68
        $region67: #{tpu_custom_call.1} parent=55 // pred_region
          %350 = dma.done [#allocation6], 8192
        $region68: #{tpu_custom_call.1} parent=55 // pred_fallthru
          _
        %s351 = sand.u32 %s35, 1
        %s352 = scalar_lea.sflag [#allocation3], %s351
        %s353 = sand.u32 %s35, 1
        %s354 = smul.addr %s353, 32
        %s355 = scalar_lea.vmem [#allocation2], %s354
        %p356 = pneg %p48
        %p357 = pneg %p45
        %p358 = pneg %p69
        %p359 = pneg %p66
        %p360 = pneg %p90
        %p361 = pneg %p87
        %p362 = pneg %p111
        %p363 = pneg %p108
        %p364 = pneg %p132
        %p365 = pneg %p129
        %p366 = pneg %p153
        %p367 = pneg %p150
        %p368 = pneg %p174
        %p369 = pneg %p171
        %p370 = pneg %p195
        %p371 = pneg %p192
        %p372 = pneg %p216
        %p373 = pneg %p213
        %p374 = pneg %p242
        %p375 = pneg %p239
        %s376 = sand.u32 %s229, 1
        %s377 = scalar_lea.sflag [#allocation4], %s376
        %s378 = sand.u32 %s229, 1
        %s379 = smul.addr %s378, 32
        %s380 = scalar_lea.vmem [#allocation8], %s379
        %s381 = smul.u32 2, %s27
        %s382 = smul.u32 2, %s27
        %v383 = vld [vmem:[%s338] sm:$0xff]
        %v384 = vld [vmem:[%s338 + $0x8] sm:$0xff]
        %v385 = vld [vmem:[%s338 + $0x10] sm:$0xff]
        %v386 = vld [vmem:[%s338 + $0x18] sm:$0xff]
        %v387 = vrot.slane %v383, 4
        %v388 = vadd.f32 %v383, %v387
        %v389 = vrot.slane %v388, 2
        %v390 = vadd.f32 %v388, %v389
        %v391 = vrot.slane %v390, 1
        %v392 = vadd.f32 %v390, %v391
        %v393 = vrot.slane %v384, 4
        %v394 = vadd.f32 %v384, %v393
        %v395 = vrot.slane %v394, 2
        %v396 = vadd.f32 %v394, %v395
        %v397 = vrot.slane %v396, 1
        %v398 = vadd.f32 %v396, %v397
        %v399 = vrot.slane %v385, 4
        %v400 = vadd.f32 %v385, %v399
        %v401 = vrot.slane %v400, 2
        %v402 = vadd.f32 %v400, %v401
        %v403 = vrot.slane %v402, 1
        %v404 = vadd.f32 %v402, %v403
        %v405 = vrot.slane %v386, 4
        %v406 = vadd.f32 %v386, %v405
        %v407 = vrot.slane %v406, 2
        %v408 = vadd.f32 %v406, %v407
        %v409 = vrot.slane %v408, 1
        %v410 = vadd.f32 %v408, %v409
        %v411 = vrcp.pop 8.0
        %v412 = vmul.f32 %v392, %v411
        %v413 = vmul.f32 %v398, %v411
        %v414 = vmul.f32 %v404, %v411
        %v415 = vmul.f32 %v410, %v411
        %v416 = vsub.f32 %v383, %v412
        %v417 = vsub.f32 %v384, %v413
        %v418 = vsub.f32 %v385, %v414
        %v419 = vsub.f32 %v386, %v415
        %v420 = vmul.f32 %v416, %v416
        %v421 = vmul.f32 %v417, %v417
        %v422 = vmul.f32 %v418, %v418
        %v423 = vmul.f32 %v419, %v419
        %v424 = vrot.slane %v420, 4
        %v425 = vadd.f32 %v420, %v424
        %v426 = vrot.slane %v425, 2
        %v427 = vadd.f32 %v425, %v426
        %v428 = vrot.slane %v427, 1
        %v429 = vadd.f32 %v427, %v428
        %v430 = vrot.slane %v421, 4
        %v431 = vadd.f32 %v421, %v430
        %v432 = vrot.slane %v431, 2
        %v433 = vadd.f32 %v431, %v432
        %v434 = vrot.slane %v433, 1
        %v435 = vadd.f32 %v433, %v434
        %v436 = vrot.slane %v422, 4
        %v437 = vadd.f32 %v422, %v436
        %v438 = vrot.slane %v437, 2
        %v439 = vadd.f32 %v437, %v438
        %v440 = vrot.slane %v439, 1
        %v441 = vadd.f32 %v439, %v440
        %v442 = vrot.slane %v423, 4
        %v443 = vadd.f32 %v423, %v442
        %v444 = vrot.slane %v443, 2
        %v445 = vadd.f32 %v443, %v444
        %v446 = vrot.slane %v445, 1
        %v447 = vadd.f32 %v445, %v446
        %v448 = vmul.f32 %v429, %v411
        %v449 = vmul.f32 %v435, %v411
        %v450 = vmul.f32 %v441, %v411
        %v451 = vmul.f32 %v447, %v411
        %v452 = vadd.f32 %v448, 1e-05
        %v453 = vadd.f32 %v449, 1e-05
        %v454 = vadd.f32 %v450, 1e-05
        %v455 = vadd.f32 %v451, 1e-05
        %v456 = vrsqrt.pop %v452
        %v457 = vrsqrt.pop %v453
        %v458 = vrsqrt.pop %v454
        %v459 = vrsqrt.pop %v455
        %v460 = vmul.f32 %v416, %v456
        %v461 = vmul.f32 %v417, %v457
        %v462 = vmul.f32 %v418, %v458
        %v463 = vmul.f32 %v419, %v459
        %v464 = vld [vmem:[%s1] sm:$0xff]
        %v465 = vld [vmem:[%s1 + $0x8] sm:$0xff]
        %v466 = vld [vmem:[%s2] sm:$0xff]
        %v467 = vld [vmem:[%s2 + $0x8] sm:$0xff]
        %469 = vset.pattern.permute.xlu0 0
        %470 = vperm.xlu0 %469, %v466
        %v471 = vpop.permute.xlu0 %470
        %474 = vset.pattern.permute.xlu0 0
        %475 = vperm.xlu0 %474, %v467
        %v476 = vpop.permute.xlu0 %475
        %vm478 = vcmask 64512
        %v480 = vsel %vm478, %v464, 0
        %v483 = vsel %vm478, %v465, 0
        %485 = vmatprep.subr.mxu0 %v461
        %486 = vmatpush1.msra.mxu0 %v460
        %487 = vmatprep.subr.mxu0 0.0
        %488 = vmatpush1.msra.mxu0 0.0
        %489 = vmatprep.subr.mxu0 0.0
        %490 = vmatpush1.msra.mxu0 0.0
        %491 = vmatprep.subr.mxu0 0.0
        %492 = vmatpush1.msra.mxu0 0.0
        %493 = vmatprep.subr.mxu0 0.0
        %494 = vmatpush1.msra.mxu0 0.0
        %495 = vmatprep.subr.mxu0 0.0
        %496 = vmatpush1.msra.mxu0 0.0
        %497 = vmatprep.subr.mxu0 0.0
        %498 = vmatpush1.msra.mxu0 0.0
        %499 = vmatprep.subr.mxu0 0.0
        %500 = vmatpush1.msra.mxu0 0.0
        %501 = vmatprep.subr.mxu0 0.0
        %502 = vmatpush1.msra.mxu0 0.0
        %503 = vmatprep.subr.mxu0 0.0
        %504 = vmatpush1.msra.mxu0 0.0
        %505 = vmatprep.subr.mxu0 0.0
        %506 = vmatpush1.msra.mxu0 0.0
        %507 = vmatprep.subr.mxu0 0.0
        %508 = vmatpush1.msra.mxu0 0.0
        %509 = vmatprep.subr.mxu0 0.0
        %510 = vmatpush1.msra.mxu0 0.0
        %511 = vmatprep.subr.mxu0 0.0
        %512 = vmatpush1.msra.mxu0 0.0
        %513 = vmatprep.subr.mxu0 0.0
        %514 = vmatpush1.msra.mxu0 0.0
        %515 = vmatprep.subr.mxu0 0.0
        %516 = vmatpush1.msra.mxu0 0.0
        %517 = vmatprep.subr.mxu0 0.0
        %518 = vmatpush1.msra.mxu0 0.0
        %519 = vmatprep.subr.mxu0 0.0
        %520 = vmatpush1.msra.mxu0 0.0
        %521 = vmatprep.subr.mxu0 0.0
        %522 = vmatpush1.msra.mxu0 0.0
        %523 = vmatprep.subr.mxu0 0.0
        %524 = vmatpush1.msra.mxu0 0.0
        %525 = vmatprep.subr.mxu0 0.0
        %526 = vmatpush1.msra.mxu0 0.0
        %527 = vmatprep.subr.mxu0 0.0
        %528 = vmatpush1.msra.mxu0 0.0
        %529 = vmatprep.subr.mxu0 0.0
        %530 = vmatpush1.msra.mxu0 0.0
        %531 = vmatprep.subr.mxu0 0.0
        %532 = vmatpush1.msra.mxu0 0.0
        %533 = vmatprep.subr.mxu0 0.0
        %534 = vmatpush1.msra.mxu0 0.0
        %535 = vmatprep.subr.mxu0 0.0
        %536 = vmatpush1.msra.mxu0 0.0
        %537 = vmatprep.subr.mxu0 0.0
        %538 = vmatpush1.msra.mxu0 0.0
        %539 = vmatprep.subr.mxu0 0.0
        %540 = vmatpush1.msra.mxu0 0.0
        %541 = vmatprep.subr.mxu0 0.0
        %542 = vmatpush1.msra.mxu0 0.0
        %543 = vmatprep.subr.mxu0 0.0
        %544 = vmatpush1.msra.mxu0 0.0
        %545 = vmatprep.subr.mxu0 0.0
        %546 = vmatpush1.msra.mxu0 0.0
        %547 = vmatprep.subr.mxu0 0.0
        %548 = vmatpush1.msra.mxu0 0.0
        %549 = vmatprep.mubr.f32.mxu0 0.0
        %550 = vmatmul.mubr.f32.gmra.mrb[0].mxu0 %v480
        %v551 = vpop.f32.mrb[0].mxu0
        %v552 = vadd.f32 %v471, %v551
        %v553 = vpop.f32.mrb[0].mxu0
        %v554 = vadd.f32 %v471, %v553
        %555 = vmatprep.mubr.f32.mxu0 0.0
        %556 = vmatmul.mubr.f32.gmra.mrb[0].mxu0 %v483
        %v557 = vpop.f32.mrb[0].mxu0
        %v558 = vadd.f32 %v476, %v557
        %v559 = vpop.f32.mrb[0].mxu0
        %v560 = vadd.f32 %v476, %v559
        %561 = vdwg.mxu0
        %v562 = vmul.f32 %v552, 0.5
        %v563 = vmul.f32 %v554, 0.5
        %v564 = vmul.f32 %v558, 0.5
        %v565 = vmul.f32 %v560, 0.5
        %v566 = vmul.f32 %v552, 0.70710677
        %v567 = vmul.f32 %v554, 0.70710677
        %v568 = vmul.f32 %v558, 0.70710677
        %v569 = vmul.f32 %v560, 0.70710677
        %v570 = vand.u32 2147483647, %v566
        %v571 = vand.u32 2147483647, %v567
        %v572 = vand.u32 2147483647, %v568
        %v573 = vand.u32 2147483647, %v569
        %v574 = vmul.f32 %v570, 0.3275911
        %v575 = vmul.f32 %v571, 0.3275911
        %v576 = vmul.f32 %v572, 0.3275911
        %v577 = vmul.f32 %v573, 0.3275911
        %v578 = vadd.f32 %v574, 1.0
        %v579 = vadd.f32 %v575, 1.0
        %v580 = vadd.f32 %v576, 1.0
        %v581 = vadd.f32 %v577, 1.0
        %v582 = vrcp.pop %v578
        %v583 = vmul.f32 1.0, %v582
        %v584 = vrcp.pop %v579
        %v585 = vmul.f32 1.0, %v584
        %v586 = vrcp.pop %v580
        %v587 = vmul.f32 1.0, %v586
        %v588 = vrcp.pop %v581
        %v589 = vmul.f32 1.0, %v588
        %v590 = vmul.f32 %v583, 1.0614054
        %v591 = vmul.f32 %v585, 1.0614054
        %v592 = vmul.f32 %v587, 1.0614054
        %v593 = vmul.f32 %v589, 1.0614054
        %v594 = vadd.f32 %v590, -1.4531521
        %v595 = vadd.f32 %v591, -1.4531521
        %v596 = vadd.f32 %v592, -1.4531521
        %v597 = vadd.f32 %v593, -1.4531521
        %v598 = vmul.f32 %v594, %v583
        %v599 = vmul.f32 %v595, %v585
        %v600 = vmul.f32 %v596, %v587
        %v601 = vmul.f32 %v597, %v589
        %v602 = vadd.f32 %v598, 1.4214138
        %v603 = vadd.f32 %v599, 1.4214138
        %v604 = vadd.f32 %v600, 1.4214138
        %v605 = vadd.f32 %v601, 1.4214138
        %v606 = vmul.f32 %v602, %v583
        %v607 = vmul.f32 %v603, %v585
        %v608 = vmul.f32 %v604, %v587
        %v609 = vmul.f32 %v605, %v589
        %v610 = vadd.f32 %v606, -0.28449672
        %v611 = vadd.f32 %v607, -0.28449672
        %v612 = vadd.f32 %v608, -0.28449672
        %v613 = vadd.f32 %v609, -0.28449672
        %v614 = vmul.f32 %v610, %v583
        %v615 = vmul.f32 %v611, %v585
        %v616 = vmul.f32 %v612, %v587
        %v617 = vmul.f32 %v613, %v589
        %v618 = vadd.f32 %v614, 0.2548296
        %v619 = vadd.f32 %v615, 0.2548296
        %v620 = vadd.f32 %v616, 0.2548296
        %v621 = vadd.f32 %v617, 0.2548296
        %v622 = vmul.f32 %v618, %v583
        %v623 = vmul.f32 %v619, %v585
        %v624 = vmul.f32 %v620, %v587
        %v625 = vmul.f32 %v621, %v589
        %v626 = vsub.f32 0.0, %v570
        %v627 = vsub.f32 0.0, %v571
        %v628 = vsub.f32 0.0, %v572
        %v629 = vsub.f32 0.0, %v573
        %v630 = vmul.f32 %v626, %v570
        %v631 = vmul.f32 %v627, %v571
        %v632 = vmul.f32 %v628, %v572
        %v633 = vmul.f32 %v629, %v573
        %v634 = vmul.f32 %v630, 1.442695
        %v635 = vpow.pop %v634
        %v636 = vmul.f32 %v631, 1.442695
        %v637 = vpow.pop %v636
        %v638 = vmul.f32 %v632, 1.442695
        %v639 = vpow.pop %v638
        %v640 = vmul.f32 %v633, 1.442695
        %v641 = vpow.pop %v640
        %v642 = vmul.f32 %v622, %v635
        %v643 = vmul.f32 %v623, %v637
        %v644 = vmul.f32 %v624, %v639
        %v645 = vmul.f32 %v625, %v641
        %v646 = vsub.f32 1.0, %v642
        %v647 = vsub.f32 1.0, %v643
        %v648 = vsub.f32 1.0, %v644
        %v649 = vsub.f32 1.0, %v645
        %vm650 = vcmp.lt.f32.partialorder %v566, 0.0
        %vm651 = vcmp.lt.f32.partialorder %v567, 0.0
        %vm652 = vcmp.lt.f32.partialorder %v568, 0.0
        %vm653 = vcmp.lt.f32.partialorder %v569, 0.0
        %v654 = vsub.f32 0.0, %v646
        %v655 = vsub.f32 0.0, %v647
        %v656 = vsub.f32 0.0, %v648
        %v657 = vsub.f32 0.0, %v649
        %v658 = vsel %vm650, %v654, %v646
        %v659 = vsel %vm651, %v655, %v647
        %v660 = vsel %vm652, %v656, %v648
        %v661 = vsel %vm653, %v657, %v649
        %v662 = vadd.f32 %v658, 1.0
        %v663 = vadd.f32 %v659, 1.0
        %v664 = vadd.f32 %v660, 1.0
        %v665 = vadd.f32 %v661, 1.0
        %v666 = vmul.f32 %v562, %v662
        %v667 = vmul.f32 %v563, %v663
        %v668 = vmul.f32 %v564, %v664
        %v669 = vmul.f32 %v565, %v665
        %670 = vmatprep.subr.mxu0 %v463
        %671 = vmatpush1.msra.mxu0 %v462
        %672 = vmatprep.subr.mxu0 0.0
        %673 = vmatpush1.msra.mxu0 0.0
        %674 = vmatprep.subr.mxu0 0.0
        %675 = vmatpush1.msra.mxu0 0.0
        %676 = vmatprep.subr.mxu0 0.0
        %677 = vmatpush1.msra.mxu0 0.0
        %678 = vmatprep.subr.mxu0 0.0
        %679 = vmatpush1.msra.mxu0 0.0
        %680 = vmatprep.subr.mxu0 0.0
        %681 = vmatpush1.msra.mxu0 0.0
        %682 = vmatprep.subr.mxu0 0.0
        %683 = vmatpush1.msra.mxu0 0.0
        %684 = vmatprep.subr.mxu0 0.0
        %685 = vmatpush1.msra.mxu0 0.0
        %686 = vmatprep.subr.mxu0 0.0
        %687 = vmatpush1.msra.mxu0 0.0
        %688 = vmatprep.subr.mxu0 0.0
        %689 = vmatpush1.msra.mxu0 0.0
        %690 = vmatprep.subr.mxu0 0.0
        %691 = vmatpush1.msra.mxu0 0.0
        %692 = vmatprep.subr.mxu0 0.0
        %693 = vmatpush1.msra.mxu0 0.0
        %694 = vmatprep.subr.mxu0 0.0
        %695 = vmatpush1.msra.mxu0 0.0
        %696 = vmatprep.subr.mxu0 0.0
        %697 = vmatpush1.msra.mxu0 0.0
        %698 = vmatprep.subr.mxu0 0.0
        %699 = vmatpush1.msra.mxu0 0.0
        %700 = vmatprep.subr.mxu0 0.0
        %701 = vmatpush1.msra.mxu0 0.0
        %702 = vmatprep.subr.mxu0 0.0
        %703 = vmatpush1.msra.mxu0 0.0
        %704 = vmatprep.subr.mxu0 0.0
        %705 = vmatpush1.msra.mxu0 0.0
        %706 = vmatprep.subr.mxu0 0.0
        %707 = vmatpush1.msra.mxu0 0.0
        %708 = vmatprep.subr.mxu0 0.0
        %709 = vmatpush1.msra.mxu0 0.0
        %710 = vmatprep.subr.mxu0 0.0
        %711 = vmatpush1.msra.mxu0 0.0
        %712 = vmatprep.subr.mxu0 0.0
        %713 = vmatpush1.msra.mxu0 0.0
        %714 = vmatprep.subr.mxu0 0.0
        %715 = vmatpush1.msra.mxu0 0.0
        %716 = vmatprep.subr.mxu0 0.0
        %717 = vmatpush1.msra.mxu0 0.0
        %718 = vmatprep.subr.mxu0 0.0
        %719 = vmatpush1.msra.mxu0 0.0
        %720 = vmatprep.subr.mxu0 0.0
        %721 = vmatpush1.msra.mxu0 0.0
        %722 = vmatprep.subr.mxu0 0.0
        %723 = vmatpush1.msra.mxu0 0.0
        %724 = vmatprep.subr.mxu0 0.0
        %725 = vmatpush1.msra.mxu0 0.0
        %726 = vmatprep.subr.mxu0 0.0
        %727 = vmatpush1.msra.mxu0 0.0
        %728 = vmatprep.subr.mxu0 0.0
        %729 = vmatpush1.msra.mxu0 0.0
        %730 = vmatprep.subr.mxu0 0.0
        %731 = vmatpush1.msra.mxu0 0.0
        %732 = vmatprep.subr.mxu0 0.0
        %733 = vmatpush1.msra.mxu0 0.0
        %734 = vmatprep.mubr.f32.mxu0 0.0
        %735 = vmatmul.mubr.f32.gmra.mrb[0].mxu0 %v480
        %v736 = vpop.f32.mrb[0].mxu0
        %v737 = vadd.f32 %v471, %v736
        %v738 = vpop.f32.mrb[0].mxu0
        %v739 = vadd.f32 %v471, %v738
        %740 = vmatprep.mubr.f32.mxu0 0.0
        %741 = vmatmul.mubr.f32.gmra.mrb[0].mxu0 %v483
        %v742 = vpop.f32.mrb[0].mxu0
        %v743 = vadd.f32 %v476, %v742
        %v744 = vpop.f32.mrb[0].mxu0
        %v745 = vadd.f32 %v476, %v744
        %746 = vdwg.mxu0
        %v747 = vmul.f32 %v737, 0.5
        %v748 = vmul.f32 %v739, 0.5
        %v749 = vmul.f32 %v743, 0.5
        %v750 = vmul.f32 %v745, 0.5
        %v751 = vmul.f32 %v737, 0.70710677
        %v752 = vmul.f32 %v739, 0.70710677
        %v753 = vmul.f32 %v743, 0.70710677
        %v754 = vmul.f32 %v745, 0.70710677
        %v755 = vand.u32 2147483647, %v751
        %v756 = vand.u32 2147483647, %v752
        %v757 = vand.u32 2147483647, %v753
        %v758 = vand.u32 2147483647, %v754
        %v759 = vmul.f32 %v755, 0.3275911
        %v760 = vmul.f32 %v756, 0.3275911
        %v761 = vmul.f32 %v757, 0.3275911
        %v762 = vmul.f32 %v758, 0.3275911
        %v763 = vadd.f32 %v759, 1.0
        %v764 = vadd.f32 %v760, 1.0
        %v765 = vadd.f32 %v761, 1.0
        %v766 = vadd.f32 %v762, 1.0
        %v767 = vrcp.pop %v763
        %v768 = vmul.f32 1.0, %v767
        %v769 = vrcp.pop %v764
        %v770 = vmul.f32 1.0, %v769
        %v771 = vrcp.pop %v765
        %v772 = vmul.f32 1.0, %v771
        %v773 = vrcp.pop %v766
        %v774 = vmul.f32 1.0, %v773
        %v775 = vmul.f32 %v768, 1.0614054
        %v776 = vmul.f32 %v770, 1.0614054
        %v777 = vmul.f32 %v772, 1.0614054
        %v778 = vmul.f32 %v774, 1.0614054
        %v779 = vadd.f32 %v775, -1.4531521
        %v780 = vadd.f32 %v776, -1.4531521
        %v781 = vadd.f32 %v777, -1.4531521
        %v782 = vadd.f32 %v778, -1.4531521
        %v783 = vmul.f32 %v779, %v768
        %v784 = vmul.f32 %v780, %v770
        %v785 = vmul.f32 %v781, %v772
        %v786 = vmul.f32 %v782, %v774
        %v787 = vadd.f32 %v783, 1.4214138
        %v788 = vadd.f32 %v784, 1.4214138
        %v789 = vadd.f32 %v785, 1.4214138
        %v790 = vadd.f32 %v786, 1.4214138
        %v791 = vmul.f32 %v787, %v768
        %v792 = vmul.f32 %v788, %v770
        %v793 = vmul.f32 %v789, %v772
        %v794 = vmul.f32 %v790, %v774
        %v795 = vadd.f32 %v791, -0.28449672
        %v796 = vadd.f32 %v792, -0.28449672
        %v797 = vadd.f32 %v793, -0.28449672
        %v798 = vadd.f32 %v794, -0.28449672
        %v799 = vmul.f32 %v795, %v768
        %v800 = vmul.f32 %v796, %v770
        %v801 = vmul.f32 %v797, %v772
        %v802 = vmul.f32 %v798, %v774
        %v803 = vadd.f32 %v799, 0.2548296
        %v804 = vadd.f32 %v800, 0.2548296
        %v805 = vadd.f32 %v801, 0.2548296
        %v806 = vadd.f32 %v802, 0.2548296
        %v807 = vmul.f32 %v803, %v768
        %v808 = vmul.f32 %v804, %v770
        %v809 = vmul.f32 %v805, %v772
        %v810 = vmul.f32 %v806, %v774
        %v811 = vsub.f32 0.0, %v755
        %v812 = vsub.f32 0.0, %v756
        %v813 = vsub.f32 0.0, %v757
        %v814 = vsub.f32 0.0, %v758
        %v815 = vmul.f32 %v811, %v755
        %v816 = vmul.f32 %v812, %v756
        %v817 = vmul.f32 %v813, %v757
        %v818 = vmul.f32 %v814, %v758
        %v819 = vmul.f32 %v815, 1.442695
        %v820 = vpow.pop %v819
        %v821 = vmul.f32 %v816, 1.442695
        %v822 = vpow.pop %v821
        %v823 = vmul.f32 %v817, 1.442695
        %v824 = vpow.pop %v823
        %v825 = vmul.f32 %v818, 1.442695
        %v826 = vpow.pop %v825
        %v827 = vmul.f32 %v807, %v820
        %v828 = vmul.f32 %v808, %v822
        %v829 = vmul.f32 %v809, %v824
        %v830 = vmul.f32 %v810, %v826
        %v831 = vsub.f32 1.0, %v827
        %v832 = vsub.f32 1.0, %v828
        %v833 = vsub.f32 1.0, %v829
        %v834 = vsub.f32 1.0, %v830
        %vm835 = vcmp.lt.f32.partialorder %v751, 0.0
        %vm836 = vcmp.lt.f32.partialorder %v752, 0.0
        %vm837 = vcmp.lt.f32.partialorder %v753, 0.0
        %vm838 = vcmp.lt.f32.partialorder %v754, 0.0
        %v839 = vsub.f32 0.0, %v831
        %v840 = vsub.f32 0.0, %v832
        %v841 = vsub.f32 0.0, %v833
        %v842 = vsub.f32 0.0, %v834
        %v843 = vsel %vm835, %v839, %v831
        %v844 = vsel %vm836, %v840, %v832
        %v845 = vsel %vm837, %v841, %v833
        %v846 = vsel %vm838, %v842, %v834
        %v847 = vadd.f32 %v843, 1.0
        %v848 = vadd.f32 %v844, 1.0
        %v849 = vadd.f32 %v845, 1.0
        %v850 = vadd.f32 %v846, 1.0
        %v851 = vmul.f32 %v747, %v847
        %v852 = vmul.f32 %v748, %v848
        %v853 = vmul.f32 %v749, %v849
        %v854 = vmul.f32 %v750, %v850
        %v855 = vld [vmem:[#allocation5] sm:$0xff]
        %v856 = vld [vmem:[#allocation5 + $0x8] sm:$0xff]
        %v857 = vld [vmem:[#allocation5 + $0x10] sm:$0xff]
        %v858 = vld [vmem:[#allocation5 + $0x18] sm:$0xff]
        %v859 = vld [vmem:[#allocation5 + $0x20] sm:$0xff]
        %v860 = vld [vmem:[#allocation5 + $0x28] sm:$0xff]
        %v861 = vld [vmem:[#allocation5 + $0x30] sm:$0xff]
        %v862 = vld [vmem:[#allocation5 + $0x38] sm:$0xff]
        %v863 = vld [vmem:[#allocation5 + $0x40] sm:$0xff]
        %v864 = vld [vmem:[#allocation5 + $0x48] sm:$0xff]
        %v865 = vld [vmem:[#allocation5 + $0x50] sm:$0xff]
        %v866 = vld [vmem:[#allocation5 + $0x58] sm:$0xff]
        %v867 = vld [vmem:[#allocation5 + $0x60] sm:$0xff]
        %v868 = vld [vmem:[#allocation5 + $0x68] sm:$0xff]
        %v869 = vld [vmem:[#allocation5 + $0x70] sm:$0xff]
        %v870 = vld [vmem:[#allocation5 + $0x78] sm:$0xff]
        %v871 = vld [vmem:[#allocation5 + $0x80] sm:$0xff]
        %v872 = vld [vmem:[#allocation5 + $0x88] sm:$0xff]
        %v873 = vld [vmem:[#allocation5 + $0x90] sm:$0xff]
        %v874 = vld [vmem:[#allocation5 + $0x98] sm:$0xff]
        %v875 = vld [vmem:[#allocation5 + $0xa0] sm:$0xff]
        %v876 = vld [vmem:[#allocation5 + $0xa8] sm:$0xff]
        %v877 = vld [vmem:[#allocation5 + $0xb0] sm:$0xff]
        %v878 = vld [vmem:[#allocation5 + $0xb8] sm:$0xff]
        %v879 = vld [vmem:[#allocation5 + $0xc0] sm:$0xff]
        %v880 = vld [vmem:[#allocation5 + $0xc8] sm:$0xff]
        %v881 = vld [vmem:[#allocation5 + $0xd0] sm:$0xff]
        %v882 = vld [vmem:[#allocation5 + $0xd8] sm:$0xff]
        %v883 = vld [vmem:[#allocation5 + $0xe0] sm:$0xff]
        %v884 = vld [vmem:[#allocation5 + $0xe8] sm:$0xff]
        %v885 = vld [vmem:[#allocation5 + $0xf0] sm:$0xff]
        %v886 = vld [vmem:[#allocation5 + $0xf8] sm:$0xff]
        %v887 = vld [vmem:[#allocation5 + $0x100] sm:$0xff]
        %v888 = vld [vmem:[#allocation5 + $0x108] sm:$0xff]
        %v889 = vld [vmem:[#allocation5 + $0x110] sm:$0xff]
        %v890 = vld [vmem:[#allocation5 + $0x118] sm:$0xff]
        %v891 = vld [vmem:[#allocation5 + $0x120] sm:$0xff]
        %v892 = vld [vmem:[#allocation5 + $0x128] sm:$0xff]
        %v893 = vld [vmem:[#allocation5 + $0x130] sm:$0xff]
        %v894 = vld [vmem:[#allocation5 + $0x138] sm:$0xff]
        %v895 = vld [vmem:[#allocation5 + $0x140] sm:$0xff]
        %v896 = vld [vmem:[#allocation5 + $0x148] sm:$0xff]
        %v897 = vld [vmem:[#allocation5 + $0x150] sm:$0xff]
        %v898 = vld [vmem:[#allocation5 + $0x158] sm:$0xff]
        %v899 = vld [vmem:[#allocation5 + $0x160] sm:$0xff]
        %v900 = vld [vmem:[#allocation5 + $0x168] sm:$0xff]
        %v901 = vld [vmem:[#allocation5 + $0x170] sm:$0xff]
        %v902 = vld [vmem:[#allocation5 + $0x178] sm:$0xff]
        %v903 = vld [vmem:[#allocation5 + $0x180] sm:$0xff]
        %v904 = vld [vmem:[#allocation5 + $0x188] sm:$0xff]
        %v905 = vld [vmem:[#allocation5 + $0x190] sm:$0xff]
        %v906 = vld [vmem:[#allocation5 + $0x198] sm:$0xff]
        %v907 = vld [vmem:[#allocation5 + $0x1a0] sm:$0xff]
        %v908 = vld [vmem:[#allocation5 + $0x1a8] sm:$0xff]
        %v909 = vld [vmem:[#allocation5 + $0x1b0] sm:$0xff]
        %v910 = vld [vmem:[#allocation5 + $0x1b8] sm:$0xff]
        %v911 = vld [vmem:[#allocation5 + $0x1c0] sm:$0xff]
        %v912 = vld [vmem:[#allocation5 + $0x1c8] sm:$0xff]
        %v913 = vld [vmem:[#allocation5 + $0x1d0] sm:$0xff]
        %v914 = vld [vmem:[#allocation5 + $0x1d8] sm:$0xff]
        %v915 = vld [vmem:[#allocation5 + $0x1e0] sm:$0xff]
        %v916 = vld [vmem:[#allocation5 + $0x1e8] sm:$0xff]
        %v917 = vld [vmem:[#allocation5 + $0x1f0] sm:$0xff]
        %v918 = vld [vmem:[#allocation5 + $0x1f8] sm:$0xff]
        %v919 = vld [vmem:[#allocation7] sm:$0xff]
        %v920 = vld [vmem:[#allocation7 + $0x8] sm:$0xff]
        %v921 = vld [vmem:[#allocation7 + $0x10] sm:$0xff]
        %v922 = vld [vmem:[#allocation7 + $0x18] sm:$0xff]
        %v923 = vld [vmem:[#allocation7 + $0x20] sm:$0xff]
        %v924 = vld [vmem:[#allocation7 + $0x28] sm:$0xff]
        %v925 = vld [vmem:[#allocation7 + $0x30] sm:$0xff]
        %v926 = vld [vmem:[#allocation7 + $0x38] sm:$0xff]
        %v927 = vld [vmem:[#allocation7 + $0x40] sm:$0xff]
        %v928 = vld [vmem:[#allocation7 + $0x48] sm:$0xff]
        %v929 = vld [vmem:[#allocation7 + $0x50] sm:$0xff]
        %v930 = vld [vmem:[#allocation7 + $0x58] sm:$0xff]
        %v931 = vld [vmem:[#allocation7 + $0x60] sm:$0xff]
        %v932 = vld [vmem:[#allocation7 + $0x68] sm:$0xff]
        %v933 = vld [vmem:[#allocation7 + $0x70] sm:$0xff]
        %v934 = vld [vmem:[#allocation7 + $0x78] sm:$0xff]
        %v935 = vld [vmem:[#allocation7 + $0x80] sm:$0xff]
        %v936 = vld [vmem:[#allocation7 + $0x88] sm:$0xff]
        %v937 = vld [vmem:[#allocation7 + $0x90] sm:$0xff]
        %v938 = vld [vmem:[#allocation7 + $0x98] sm:$0xff]
        %v939 = vld [vmem:[#allocation7 + $0xa0] sm:$0xff]
        %v940 = vld [vmem:[#allocation7 + $0xa8] sm:$0xff]
        %v941 = vld [vmem:[#allocation7 + $0xb0] sm:$0xff]
        %v942 = vld [vmem:[#allocation7 + $0xb8] sm:$0xff]
        %v943 = vld [vmem:[#allocation7 + $0xc0] sm:$0xff]
        %v944 = vld [vmem:[#allocation7 + $0xc8] sm:$0xff]
        %v945 = vld [vmem:[#allocation7 + $0xd0] sm:$0xff]
        %v946 = vld [vmem:[#allocation7 + $0xd8] sm:$0xff]
        %v947 = vld [vmem:[#allocation7 + $0xe0] sm:$0xff]
        %v948 = vld [vmem:[#allocation7 + $0xe8] sm:$0xff]
        %v949 = vld [vmem:[#allocation7 + $0xf0] sm:$0xff]
        %v950 = vld [vmem:[#allocation7 + $0xf8] sm:$0xff]
        %v951 = vld [vmem:[#allocation7 + $0x100] sm:$0xff]
        %v952 = vld [vmem:[#allocation7 + $0x108] sm:$0xff]
        %v953 = vld [vmem:[#allocation7 + $0x110] sm:$0xff]
        %v954 = vld [vmem:[#allocation7 + $0x118] sm:$0xff]
        %v955 = vld [vmem:[#allocation7 + $0x120] sm:$0xff]
        %v956 = vld [vmem:[#allocation7 + $0x128] sm:$0xff]
        %v957 = vld [vmem:[#allocation7 + $0x130] sm:$0xff]
        %v958 = vld [vmem:[#allocation7 + $0x138] sm:$0xff]
        %v959 = vld [vmem:[#allocation7 + $0x140] sm:$0xff]
        %v960 = vld [vmem:[#allocation7 + $0x148] sm:$0xff]
        %v961 = vld [vmem:[#allocation7 + $0x150] sm:$0xff]
        %v962 = vld [vmem:[#allocation7 + $0x158] sm:$0xff]
        %v963 = vld [vmem:[#allocation7 + $0x160] sm:$0xff]
        %v964 = vld [vmem:[#allocation7 + $0x168] sm:$0xff]
        %v965 = vld [vmem:[#allocation7 + $0x170] sm:$0xff]
        %v966 = vld [vmem:[#allocation7 + $0x178] sm:$0xff]
        %v967 = vld [vmem:[#allocation7 + $0x180] sm:$0xff]
        %v968 = vld [vmem:[#allocation7 + $0x188] sm:$0xff]
        %v969 = vld [vmem:[#allocation7 + $0x190] sm:$0xff]
        %v970 = vld [vmem:[#allocation7 + $0x198] sm:$0xff]
        %v971 = vld [vmem:[#allocation7 + $0x1a0] sm:$0xff]
        %v972 = vld [vmem:[#allocation7 + $0x1a8] sm:$0xff]
        %v973 = vld [vmem:[#allocation7 + $0x1b0] sm:$0xff]
        %v974 = vld [vmem:[#allocation7 + $0x1b8] sm:$0xff]
        %v975 = vld [vmem:[#allocation7 + $0x1c0] sm:$0xff]
        %v976 = vld [vmem:[#allocation7 + $0x1c8] sm:$0xff]
        %v977 = vld [vmem:[#allocation7 + $0x1d0] sm:$0xff]
        %v978 = vld [vmem:[#allocation7 + $0x1d8] sm:$0xff]
        %v979 = vld [vmem:[#allocation7 + $0x1e0] sm:$0xff]
        %v980 = vld [vmem:[#allocation7 + $0x1e8] sm:$0xff]
        %v981 = vld [vmem:[#allocation7 + $0x1f0] sm:$0xff]
        %v982 = vld [vmem:[#allocation7 + $0x1f8] sm:$0xff]
        %v983 = vld [vmem:[%s4] sm:$0x3]
        %v985 = vlaneseq
        %v986 = vshrl.u32 %v985, 7
        %v987 = vsub.s32 0, %v986
        %v988 = vrot.slane %v983, %v987
        %v989 = vlaneseq
        %v990 = vshrl.u32 %v989, 7
        %v991 = vsub.s32 1, %v990
        %v992 = vrot.slane %v983, %v991
        %995 = vmatprep.subr.mxu0 %v856
        %996 = vmatpush1.msra.mxu0 %v855
        %997 = vmatprep.subr.mxu0 %v858
        %998 = vmatpush1.msra.mxu0 %v857
        %999 = vmatprep.subr.mxu0 %v860
        %1000 = vmatpush1.msra.mxu0 %v859
        %1001 = vmatprep.subr.mxu0 %v862
        %1002 = vmatpush1.msra.mxu0 %v861
        %1003 = vmatprep.subr.mxu0 %v864
        %1004 = vmatpush1.msra.mxu0 %v863
        %1005 = vmatprep.subr.mxu0 %v866
        %1006 = vmatpush1.msra.mxu0 %v865
        %1007 = vmatprep.subr.mxu0 %v868
        %1008 = vmatpush1.msra.mxu0 %v867
        %1009 = vmatprep.subr.mxu0 %v870
        %1010 = vmatpush1.msra.mxu0 %v869
        %1011 = vmatprep.subr.mxu0 %v872
        %1012 = vmatpush1.msra.mxu0 %v871
        %1013 = vmatprep.subr.mxu0 %v874
        %1014 = vmatpush1.msra.mxu0 %v873
        %1015 = vmatprep.subr.mxu0 %v876
        %1016 = vmatpush1.msra.mxu0 %v875
        %1017 = vmatprep.subr.mxu0 %v878
        %1018 = vmatpush1.msra.mxu0 %v877
        %1019 = vmatprep.subr.mxu0 %v880
        %1020 = vmatpush1.msra.mxu0 %v879
        %1021 = vmatprep.subr.mxu0 %v882
        %1022 = vmatpush1.msra.mxu0 %v881
        %1023 = vmatprep.subr.mxu0 %v884
        %1024 = vmatpush1.msra.mxu0 %v883
        %1025 = vmatprep.subr.mxu0 %v886
        %1026 = vmatpush1.msra.mxu0 %v885
        %1027 = vmatprep.subr.mxu0 %v888
        %1028 = vmatpush1.msra.mxu0 %v887
        %1029 = vmatprep.subr.mxu0 %v890
        %1030 = vmatpush1.msra.mxu0 %v889
        %1031 = vmatprep.subr.mxu0 %v892
        %1032 = vmatpush1.msra.mxu0 %v891
        %1033 = vmatprep.subr.mxu0 %v894
        %1034 = vmatpush1.msra.mxu0 %v893
        %1035 = vmatprep.subr.mxu0 %v896
        %1036 = vmatpush1.msra.mxu0 %v895
        %1037 = vmatprep.subr.mxu0 %v898
        %1038 = vmatpush1.msra.mxu0 %v897
        %1039 = vmatprep.subr.mxu0 %v900
        %1040 = vmatpush1.msra.mxu0 %v899
        %1041 = vmatprep.subr.mxu0 %v902
        %1042 = vmatpush1.msra.mxu0 %v901
        %1043 = vmatprep.subr.mxu0 %v904
        %1044 = vmatpush1.msra.mxu0 %v903
        %1045 = vmatprep.subr.mxu0 %v906
        %1046 = vmatpush1.msra.mxu0 %v905
        %1047 = vmatprep.subr.mxu0 %v908
        %1048 = vmatpush1.msra.mxu0 %v907
        %1049 = vmatprep.subr.mxu0 %v910
        %1050 = vmatpush1.msra.mxu0 %v909
        %1051 = vmatprep.subr.mxu0 %v912
        %1052 = vmatpush1.msra.mxu0 %v911
        %1053 = vmatprep.subr.mxu0 %v914
        %1054 = vmatpush1.msra.mxu0 %v913
        %1055 = vmatprep.subr.mxu0 %v916
        %1056 = vmatpush1.msra.mxu0 %v915
        %1057 = vmatprep.subr.mxu0 %v918
        %1058 = vmatpush1.msra.mxu0 %v917
        %1059 = vmatprep.mubr.f32.mxu0 %v667
        %1060 = vmatmul.mubr.f32.gmra.mrb[0].mxu0 %v666
        %v1061 = vpop.f32.mrb[0].mxu0
        %v1062 = vadd.f32 %v988, %v1061
        %v1063 = vpop.f32.mrb[0].mxu0
        %v1064 = vadd.f32 %v992, %v1063
        %1065 = vmatprep.mubr.f32.mxu0 %v852
        %1066 = vmatmul.mubr.f32.gmra.mrb[0].mxu0 %v851
        %v1067 = vpop.f32.mrb[0].mxu0
        %v1068 = vadd.f32 %v988, %v1067
        %v1069 = vpop.f32.mrb[0].mxu0
        %v1070 = vadd.f32 %v992, %v1069
        %1071 = vdwg.mxu0
        %v1072 = vld [vmem:[%s6] sm:$0x3]
        %v1074 = vlaneseq
        %v1075 = vshrl.u32 %v1074, 7
        %v1076 = vsub.s32 0, %v1075
        %v1077 = vrot.slane %v1072, %v1076
        %v1078 = vlaneseq
        %v1079 = vshrl.u32 %v1078, 7
        %v1080 = vsub.s32 1, %v1079
        %v1081 = vrot.slane %v1072, %v1080
        %1084 = vmatprep.subr.mxu0 %v920
        %1085 = vmatpush1.msra.mxu0 %v919
        %1086 = vmatprep.subr.mxu0 %v922
        %1087 = vmatpush1.msra.mxu0 %v921
        %1088 = vmatprep.subr.mxu0 %v924
        %1089 = vmatpush1.msra.mxu0 %v923
        %1090 = vmatprep.subr.mxu0 %v926
        %1091 = vmatpush1.msra.mxu0 %v925
        %1092 = vmatprep.subr.mxu0 %v928
        %1093 = vmatpush1.msra.mxu0 %v927
        %1094 = vmatprep.subr.mxu0 %v930
        %1095 = vmatpush1.msra.mxu0 %v929
        %1096 = vmatprep.subr.mxu0 %v932
        %1097 = vmatpush1.msra.mxu0 %v931
        %1098 = vmatprep.subr.mxu0 %v934
        %1099 = vmatpush1.msra.mxu0 %v933
        %1100 = vmatprep.subr.mxu0 %v936
        %1101 = vmatpush1.msra.mxu0 %v935
        %1102 = vmatprep.subr.mxu0 %v938
        %1103 = vmatpush1.msra.mxu0 %v937
        %1104 = vmatprep.subr.mxu0 %v940
        %1105 = vmatpush1.msra.mxu0 %v939
        %1106 = vmatprep.subr.mxu0 %v942
        %1107 = vmatpush1.msra.mxu0 %v941
        %1108 = vmatprep.subr.mxu0 %v944
        %1109 = vmatpush1.msra.mxu0 %v943
        %1110 = vmatprep.subr.mxu0 %v946
        %1111 = vmatpush1.msra.mxu0 %v945
        %1112 = vmatprep.subr.mxu0 %v948
        %1113 = vmatpush1.msra.mxu0 %v947
        %1114 = vmatprep.subr.mxu0 %v950
        %1115 = vmatpush1.msra.mxu0 %v949
        %1116 = vmatprep.subr.mxu0 %v952
        %1117 = vmatpush1.msra.mxu0 %v951
        %1118 = vmatprep.subr.mxu0 %v954
        %1119 = vmatpush1.msra.mxu0 %v953
        %1120 = vmatprep.subr.mxu0 %v956
        %1121 = vmatpush1.msra.mxu0 %v955
        %1122 = vmatprep.subr.mxu0 %v958
        %1123 = vmatpush1.msra.mxu0 %v957
        %1124 = vmatprep.subr.mxu0 %v960
        %1125 = vmatpush1.msra.mxu0 %v959
        %1126 = vmatprep.subr.mxu0 %v962
        %1127 = vmatpush1.msra.mxu0 %v961
        %1128 = vmatprep.subr.mxu0 %v964
        %1129 = vmatpush1.msra.mxu0 %v963
        %1130 = vmatprep.subr.mxu0 %v966
        %1131 = vmatpush1.msra.mxu0 %v965
        %1132 = vmatprep.subr.mxu0 %v968
        %1133 = vmatpush1.msra.mxu0 %v967
        %1134 = vmatprep.subr.mxu0 %v970
        %1135 = vmatpush1.msra.mxu0 %v969
        %1136 = vmatprep.subr.mxu0 %v972
        %1137 = vmatpush1.msra.mxu0 %v971
        %1138 = vmatprep.subr.mxu0 %v974
        %1139 = vmatpush1.msra.mxu0 %v973
        %1140 = vmatprep.subr.mxu0 %v976
        %1141 = vmatpush1.msra.mxu0 %v975
        %1142 = vmatprep.subr.mxu0 %v978
        %1143 = vmatpush1.msra.mxu0 %v977
        %1144 = vmatprep.subr.mxu0 %v980
        %1145 = vmatpush1.msra.mxu0 %v979
        %1146 = vmatprep.subr.mxu0 %v982
        %1147 = vmatpush1.msra.mxu0 %v981
        %1148 = vmatprep.mubr.f32.mxu0 %v669
        %1149 = vmatmul.mubr.f32.gmra.mrb[0].mxu0 %v668
        %v1150 = vpop.f32.mrb[0].mxu0
        %v1151 = vadd.f32 %v1077, %v1150
        %v1152 = vpop.f32.mrb[0].mxu0
        %v1153 = vadd.f32 %v1081, %v1152
        %1154 = vmatprep.mubr.f32.mxu0 %v854
        %1155 = vmatmul.mubr.f32.gmra.mrb[0].mxu0 %v853
        %v1156 = vpop.f32.mrb[0].mxu0
        %v1157 = vadd.f32 %v1077, %v1156
        %v1158 = vpop.f32.mrb[0].mxu0
        %v1159 = vadd.f32 %v1081, %v1158
        %1160 = vdwg.mxu0
        %v1161 = vld [vmem:[%s7] sm:$0xff]
        %v1162 = vld [vmem:[%s8] sm:$0xff]
        %1164 = vset.pattern.permute.xlu0 0
        %1165 = vperm.xlu0 %1164, %v1162
        %v1166 = vpop.permute.xlu0 %1165
        %vm1168 = vcmask 130048
        %v1170 = vsel %vm1168, %v1161, 0
        %1172 = vmatprep.subr.mxu0 %v1064
        %1173 = vmatpush1.msra.mxu0 %v1062
        %1174 = vmatprep.subr.mxu0 %v1153
        %1175 = vmatpush1.msra.mxu0 %v1151
        %1176 = vmatprep.subr.mxu0 0.0
        %1177 = vmatpush1.msra.mxu0 0.0
        %1178 = vmatprep.subr.mxu0 0.0
        %1179 = vmatpush1.msra.mxu0 0.0
        %1180 = vmatprep.subr.mxu0 0.0
        %1181 = vmatpush1.msra.mxu0 0.0
        %1182 = vmatprep.subr.mxu0 0.0
        %1183 = vmatpush1.msra.mxu0 0.0
        %1184 = vmatprep.subr.mxu0 0.0
        %1185 = vmatpush1.msra.mxu0 0.0
        %1186 = vmatprep.subr.mxu0 0.0
        %1187 = vmatpush1.msra.mxu0 0.0
        %1188 = vmatprep.subr.mxu0 0.0
        %1189 = vmatpush1.msra.mxu0 0.0
        %1190 = vmatprep.subr.mxu0 0.0
        %1191 = vmatpush1.msra.mxu0 0.0
        %1192 = vmatprep.subr.mxu0 0.0
        %1193 = vmatpush1.msra.mxu0 0.0
        %1194 = vmatprep.subr.mxu0 0.0
        %1195 = vmatpush1.msra.mxu0 0.0
        %1196 = vmatprep.subr.mxu0 0.0
        %1197 = vmatpush1.msra.mxu0 0.0
        %1198 = vmatprep.subr.mxu0 0.0
        %1199 = vmatpush1.msra.mxu0 0.0
        %1200 = vmatprep.subr.mxu0 0.0
        %1201 = vmatpush1.msra.mxu0 0.0
        %1202 = vmatprep.subr.mxu0 0.0
        %1203 = vmatpush1.msra.mxu0 0.0
        %1204 = vmatprep.subr.mxu0 0.0
        %1205 = vmatpush1.msra.mxu0 0.0
        %1206 = vmatprep.subr.mxu0 0.0
        %1207 = vmatpush1.msra.mxu0 0.0
        %1208 = vmatprep.subr.mxu0 0.0
        %1209 = vmatpush1.msra.mxu0 0.0
        %1210 = vmatprep.subr.mxu0 0.0
        %1211 = vmatpush1.msra.mxu0 0.0
        %1212 = vmatprep.subr.mxu0 0.0
        %1213 = vmatpush1.msra.mxu0 0.0
        %1214 = vmatprep.subr.mxu0 0.0
        %1215 = vmatpush1.msra.mxu0 0.0
        %1216 = vmatprep.subr.mxu0 0.0
        %1217 = vmatpush1.msra.mxu0 0.0
        %1218 = vmatprep.subr.mxu0 0.0
        %1219 = vmatpush1.msra.mxu0 0.0
        %1220 = vmatprep.subr.mxu0 0.0
        %1221 = vmatpush1.msra.mxu0 0.0
        %1222 = vmatprep.subr.mxu0 0.0
        %1223 = vmatpush1.msra.mxu0 0.0
        %1224 = vmatprep.subr.mxu0 0.0
        %1225 = vmatpush1.msra.mxu0 0.0
        %1226 = vmatprep.subr.mxu0 0.0
        %1227 = vmatpush1.msra.mxu0 0.0
        %1228 = vmatprep.subr.mxu0 0.0
        %1229 = vmatpush1.msra.mxu0 0.0
        %1230 = vmatprep.subr.mxu0 0.0
        %1231 = vmatpush1.msra.mxu0 0.0
        %1232 = vmatprep.subr.mxu0 0.0
        %1233 = vmatpush1.msra.mxu0 0.0
        %1234 = vmatprep.subr.mxu0 0.0
        %1235 = vmatpush1.msra.mxu0 0.0
        %1236 = vmatprep.mubr.f32.mxu0 0.0
        %1237 = vmatmul.mubr.f32.gmra.mrb[0].mxu0 %v1170
        %v1238 = vpop.f32.mrb[0].mxu0
        %v1239 = vadd.f32 %v1166, %v1238
        %v1240 = vpop.f32.mrb[0].mxu0
        %v1241 = vadd.f32 %v1166, %v1240
        %1242 = vdwg.mxu0
        %1243 = vst [vmem:[%s380] sm:$0xff] %v1239
        %1244 = vst [vmem:[%s380 + $0x8] sm:$0xff] %v1241
        %1245 = vmatprep.subr.mxu0 %v1070
        %1246 = vmatpush1.msra.mxu0 %v1068
        %1247 = vmatprep.subr.mxu0 %v1159
        %1248 = vmatpush1.msra.mxu0 %v1157
        %1249 = vmatprep.subr.mxu0 0.0
        %1250 = vmatpush1.msra.mxu0 0.0
        %1251 = vmatprep.subr.mxu0 0.0
        %1252 = vmatpush1.msra.mxu0 0.0
        %1253 = vmatprep.subr.mxu0 0.0
        %1254 = vmatpush1.msra.mxu0 0.0
        %1255 = vmatprep.subr.mxu0 0.0
        %1256 = vmatpush1.msra.mxu0 0.0
        %1257 = vmatprep.subr.mxu0 0.0
        %1258 = vmatpush1.msra.mxu0 0.0
        %1259 = vmatprep.subr.mxu0 0.0
        %1260 = vmatpush1.msra.mxu0 0.0
        %1261 = vmatprep.subr.mxu0 0.0
        %1262 = vmatpush1.msra.mxu0 0.0
        %1263 = vmatprep.subr.mxu0 0.0
        %1264 = vmatpush1.msra.mxu0 0.0
        %1265 = vmatprep.subr.mxu0 0.0
        %1266 = vmatpush1.msra.mxu0 0.0
        %1267 = vmatprep.subr.mxu0 0.0
        %1268 = vmatpush1.msra.mxu0 0.0
        %1269 = vmatprep.subr.mxu0 0.0
        %1270 = vmatpush1.msra.mxu0 0.0
        %1271 = vmatprep.subr.mxu0 0.0
        %1272 = vmatpush1.msra.mxu0 0.0
        %1273 = vmatprep.subr.mxu0 0.0
        %1274 = vmatpush1.msra.mxu0 0.0
        %1275 = vmatprep.subr.mxu0 0.0
        %1276 = vmatpush1.msra.mxu0 0.0
        %1277 = vmatprep.subr.mxu0 0.0
        %1278 = vmatpush1.msra.mxu0 0.0
        %1279 = vmatprep.subr.mxu0 0.0
        %1280 = vmatpush1.msra.mxu0 0.0
        %1281 = vmatprep.subr.mxu0 0.0
        %1282 = vmatpush1.msra.mxu0 0.0
        %1283 = vmatprep.subr.mxu0 0.0
        %1284 = vmatpush1.msra.mxu0 0.0
        %1285 = vmatprep.subr.mxu0 0.0
        %1286 = vmatpush1.msra.mxu0 0.0
        %1287 = vmatprep.subr.mxu0 0.0
        %1288 = vmatpush1.msra.mxu0 0.0
        %1289 = vmatprep.subr.mxu0 0.0
        %1290 = vmatpush1.msra.mxu0 0.0
        %1291 = vmatprep.subr.mxu0 0.0
        %1292 = vmatpush1.msra.mxu0 0.0
        %1293 = vmatprep.subr.mxu0 0.0
        %1294 = vmatpush1.msra.mxu0 0.0
        %1295 = vmatprep.subr.mxu0 0.0
        %1296 = vmatpush1.msra.mxu0 0.0
        %1297 = vmatprep.subr.mxu0 0.0
        %1298 = vmatpush1.msra.mxu0 0.0
        %1299 = vmatprep.subr.mxu0 0.0
        %1300 = vmatpush1.msra.mxu0 0.0
        %1301 = vmatprep.subr.mxu0 0.0
        %1302 = vmatpush1.msra.mxu0 0.0
        %1303 = vmatprep.subr.mxu0 0.0
        %1304 = vmatpush1.msra.mxu0 0.0
        %1305 = vmatprep.subr.mxu0 0.0
        %1306 = vmatpush1.msra.mxu0 0.0
        %1307 = vmatprep.subr.mxu0 0.0
        %1308 = vmatpush1.msra.mxu0 0.0
        %1309 = vmatprep.mubr.f32.mxu0 0.0
        %1310 = vmatmul.mubr.f32.gmra.mrb[0].mxu0 %v1170
        %v1311 = vpop.f32.mrb[0].mxu0
        %v1312 = vadd.f32 %v1166, %v1311
        %v1313 = vpop.f32.mrb[0].mxu0
        %v1314 = vadd.f32 %v1166, %v1313
        %1315 = vdwg.mxu0
        %s1316 = scalar_lea.vmem %s380, 16 [#allocation8]
        %1317 = vst [vmem:[%s1316] sm:$0xff] %v1312
        %1318 = vst [vmem:[%s1316 + $0x8] sm:$0xff] %v1314
        %s1319 = sand.u32 %s229, 1
        %s1320 = scalar_lea.sflag [#allocation4], %s1319
        %s1321 = sand.u32 %s229, 1
        %s1322 = smul.addr %s1321, 32
        %s1323 = scalar_lea.vmem [#allocation8], %s1322
        // Predicated region
        $region69: #{tpu_custom_call.1} parent=55 // pred_check
          %p1324 = pneg %p239
        $region70: #{tpu_custom_call.1} parent=55 // pred_check_branch
          %1326 = sbr.rel (%p1324) target = $region72
        $region71: #{tpu_custom_call.1} parent=55 // pred_region
          %s1327 = smul.u32 2, %s27
          %s1329 = ssub.s32 512, 512
          %1330 = vsyncadd %s1320, %s1329
          %s1331 = smul.addr %s1327, 2
          %s1332 = smul.addr %s1331, 128
          %s1333 = scalar_lea.hbm %s9, %s1332
          %s1334 = sshll.u32 %s1323, 4
          %s1335 = int_to_ptr.vmem [resolvable:$true] %s1334
          %1340 = dma.vmem_to_hbm [thread:$0]  %s1335, 512, %s1333, %s1320, 256, 256, 16
        $region72: #{tpu_custom_call.1} parent=55 // pred_fallthru
          _
      $region56: #{tpu_custom_call.1} parent=5 // pred_fallthru
        _
      %p1341 = scmp.le.s32.totalorder 2, %s22
      // Predicated region
      $region73: #{tpu_custom_call.1} parent=5 // pred_check
        %p1342 = pneg %p1341
      $region74: #{tpu_custom_call.1} parent=5 // pred_check_branch
        %1344 = sbr.rel (%p1342) target = $region76
      $region75: #{tpu_custom_call.1} parent=5 // pred_region
        %s1345 = ssub.s32 %s22, 2
        // Predicated region
        $region77: #{tpu_custom_call.1} parent=75 // pred_check
          %p1346 = pneg %p245
        $region78: #{tpu_custom_call.1} parent=75 // pred_check_branch
          %1348 = sbr.rel (%p1346) target = $region80
        $region79: #{tpu_custom_call.1} parent=75 // pred_region
          %s1349 = sand.u32 %s230, 1
          %s1350 = scalar_lea.sflag [#allocation4], %s1349
          %s1351 = sand.u32 %s230, 1
          %s1352 = smul.addr %s1351, 32
          %s1353 = scalar_lea.vmem [#allocation8], %s1352
          %1354 = dma.done %s1350, 512
        $region80: #{tpu_custom_call.1} parent=75 // pred_fallthru
          _
      $region76: #{tpu_custom_call.1} parent=5 // pred_fallthru
        _
    $region6: #{tpu_custom_call.1} parent=1 // loop_footer
      %s26 = sadd.s32 1, %s22
    $region7: #{tpu_custom_call.1} parent=1 // loop_footer_branch
      %21 = sbr.rel target = $region3
    $region8: #{tpu_custom_call.1} parent=1 // loop_exit
      _
    %1355 = vsyncpa [#allocation3], 1
    %s1356 = scalar_lea.sflag [#allocation3], 1
    %1357 = vsyncpa %s1356, 1
    %1358 = vsyncpa [#allocation6], 1
    %1359 = vsyncpa [#allocation4], 1
    %s1360 = scalar_lea.sflag [#allocation4], 1
    %1361 = vsyncpa %s1360, 1

</llo_original>
